<compile_context>
chip_gen: v7x
topology: tpu7x:2x2x1
jax: 0.10.0
libtpu: 0.0.40
codegen_flags: <defaults>
</compile_context>

<pallas_src>
import numpy as np

import jax
import jax.numpy as jnp
from jax.experimental import pallas as pl
from jax.experimental.pallas import tpu as pltpu


# --------------------------------- kernel ------------------------------------
def _cnn_mnist_kernel(x_ref, a1_ref, b1_ref, a2_ref, b2_ref,
                      wf1_ref, bf1_ref, wf2_ref, bf2_ref, out_ref):
    TB = x_ref.shape[1]
    x = x_ref[...]                                   # (28, TB, 28): H major, W on lanes

    # conv1 (1->3, 5x5 VALID): 5 MXU matmuls, contraction over the input width (28).
    # acc1 rows = (out_row, n); cols = (j%2)*36 + c*12 + j//2 (parity-split for W-pool).
    acc1 = jnp.zeros((24 * TB, 72), jnp.float32)
    for ki in range(5):
        slab = x[ki:ki + 24].reshape(24 * TB, 28)
        acc1 = acc1 + jnp.dot(slab, a1_ref[ki], preferred_element_type=jnp.float32)
    h = acc1 + b1_ref[...]

    # 2x2 max-pool + relu.
    h = h.reshape(12, 2, TB, 72)
    h = jnp.maximum(h[:, 0], h[:, 1])                # pool H -> (12, TB, 72)
    h = jnp.maximum(h[..., :36], h[..., 36:])        # pool W -> (12, TB, 36), lane = c*12 + w
    h = jnp.maximum(h, 0.0)

    # conv2 (3->20, 5x5 VALID): 5 MXU matmuls, contraction over W*C = 36 lanes.
    # cols = (j%2)*128 + o*4 + j//2 (80 valid cols per 128-lane half -> aligned W-pool).
    # TODO(synk): Dropout2d / F.dropout are identity (eval mode); training-mode
    #             stochastic dropout (pltpu.prng_*) is not implemented here.
    acc2 = jnp.zeros((8 * TB, 256), jnp.float32)
    for ki in range(5):
        slab = h[ki:ki + 8].reshape(8 * TB, 36)
        acc2 = acc2 + jnp.dot(slab, a2_ref[ki], preferred_element_type=jnp.float32)
    g = acc2 + b2_ref[...]

    g = g.reshape(4, 2, TB, 256)
    g = jnp.maximum(g[:, 0], g[:, 1])                # pool H -> (4, TB, 256)
    g = jnp.maximum(g[..., :80], g[..., 128:208])    # pool W -> (4, TB, 80), lane = c*4 + w
    g = jnp.maximum(g, 0.0)

    # fc1 + relu: sum of 4 per-spatial-row matmuls (avoids a 320-wide lane concat).
    z = jnp.zeros((TB, 50), jnp.float32)
    for r in range(4):
        z = z + jnp.dot(g[r], wf1_ref[r], preferred_element_type=jnp.float32)
    z = jnp.maximum(z + bf1_ref[...], 0.0)

    # dropout (identity in eval) -> fc2 (weights lane-padded to 128 -> unmasked store).
    out = jnp.dot(z, wf2_ref[...], preferred_element_type=jnp.float32) + bf2_ref[...]
    out_ref[...] = out.astype(out_ref.dtype)


# ---------------------------- weight preparation ------------------------------
def _round_up(v, m):
    return (v + m - 1) // m * m


def _prepare_weights(params):
    f32 = jnp.float32

    # conv1 banded matrices: A1[ki, m, col], col = (j%2)*36 + c*12 + j//2.
    w1 = params["conv1_w"].astype(f32)                                   # (3, 1, 5, 5)
    cols1 = np.arange(72)
    par1, rem1 = cols1 // 36, cols1 % 36
    c_of1, j_of1 = rem1 // 12, 2 * (rem1 % 12) + par1
    kj1 = np.arange(28)[:, None] - j_of1[None, :]                        # (28, 72)
    mask1 = (kj1 >= 0) & (kj1 <= 4)
    a1 = w1[np.broadcast_to(c_of1[None, :], (28, 72)), 0, :, np.clip(kj1, 0, 4)]   # (28,72,5)
    a1 = jnp.where(jnp.asarray(mask1)[..., None], a1, 0.0).transpose(2, 0, 1)      # (5,28,72)
    b1 = params["conv1_b"].astype(f32)[c_of1][None, :]                   # (1, 72)

    # conv2 banded matrices: A2[ki, l, col], l = c*12 + m, col = (j%2)*128 + o*4 + j//2.
    w2 = params["conv2_w"].astype(f32)                                   # (20, 3, 5, 5)
    cols2 = np.arange(256)
    par2, rem2 = cols2 // 128, cols2 % 128
    valid2 = rem2 < 80
    o_of2 = np.minimum(rem2 // 4, 19)
    j_of2 = 2 * (rem2 % 4) + par2
    c_l = np.arange(36) // 12
    m_l = np.arange(36) % 12
    kj2 = m_l[:, None] - j_of2[None, :]                                  # (36, 256)
    mask2 = (kj2 >= 0) & (kj2 <= 4) & valid2[None, :]
    a2 = w2[np.broadcast_to(o_of2[None, :], (36, 256)),
            np.broadcast_to(c_l[:, None], (36, 256)), :, np.clip(kj2, 0, 4)]       # (36,256,5)
    a2 = jnp.where(jnp.asarray(mask2)[..., None], a2, 0.0).transpose(2, 0, 1)      # (5,36,256)
    b2 = jnp.where(jnp.asarray(valid2),
                   params["conv2_b"].astype(f32)[o_of2], 0.0)[None, :]   # (1, 256)

    # fc1: reorder rows from PyTorch NCHW flatten (c*16 + h*4 + w) to (h, c*4 + w).
    wf1 = params["fc1_w"].astype(f32).T.reshape(20, 4, 4, 50)            # (c, h, w, 50)
    wf1 = wf1.transpose(1, 0, 2, 3).reshape(4, 80, 50)                   # (h, c*4+w, 50)
    bf1 = params["fc1_b"].astype(f32)[None, :]                           # (1, 50)

    # fc2, lane-padded to 128 output columns.
    wf2 = jnp.zeros((50, 128), f32).at[:, :10].set(params["fc2_w"].astype(f32).T)
    bf2 = jnp.zeros((1, 128), f32).at[0, :10].set(params["fc2_b"].astype(f32))
    return a1, b1, a2, b2, wf1, bf1, wf2, bf2


# -------------------------------- wrapper ------------------------------------
def cnn_mnist_forward(x_nchw, params, *, batch_tile=128):
    """x_nchw: (N, 1, 28, 28) float32; params hold PyTorch-layout weights."""
    N = x_nchw.shape[0]
    TB = max(8, (min(batch_tile, _round_up(N, 8)) // 8) * 8)             # multiple of 8
    Npad = _round_up(N, TB)

    x = x_nchw[:, 0].astype(jnp.float32)                                 # (N, 28, 28)
    if Npad != N:
        x = jnp.pad(x, ((0, Npad - N), (0, 0), (0, 0)))
    x = jnp.transpose(x, (1, 0, 2))                                      # (28, Npad, 28)

    a1, b1, a2, b2, wf1, bf1, wf2, bf2 = _prepare_weights(params)

    out = pl.pallas_call(
        _cnn_mnist_kernel,
        out_shape=jax.ShapeDtypeStruct((Npad, 128), jnp.float32),
        grid=(Npad // TB,),
        in_specs=[
            pl.BlockSpec((28, TB, 28), lambda b: (0, b, 0)),
            pl.BlockSpec((5, 28, 72), lambda b: (0, 0, 0)),
            pl.BlockSpec((1, 72), lambda b: (0, 0)),
            pl.BlockSpec((5, 36, 256), lambda b: (0, 0, 0)),
            pl.BlockSpec((1, 256), lambda b: (0, 0)),
            pl.BlockSpec((4, 80, 50), lambda b: (0, 0, 0)),
            pl.BlockSpec((1, 50), lambda b: (0, 0)),
            pl.BlockSpec((50, 128), lambda b: (0, 0)),
            pl.BlockSpec((1, 128), lambda b: (0, 0)),
        ],
        out_specs=pl.BlockSpec((TB, 128), lambda b: (b, 0)),
        compiler_params=pltpu.CompilerParams(
            dimension_semantics=("parallel",)),
    )(x, a1, b1, a2, b2, wf1, bf1, wf2, bf2)
    return out[:N, :10]


# ----------------------- deterministic params + reference --------------------
def init_params(key):
    ks = jax.random.split(key, 8)
    g = lambda k, shape, scale: scale * jax.random.normal(k, shape, jnp.float32)
    return {
        "conv1_w": g(ks[0], (3, 1, 5, 5), 0.2),
        "conv1_b": g(ks[1], (3,), 0.1),
        "conv2_w": g(ks[2], (20, 3, 5, 5), 0.1),
        "conv2_b": g(ks[3], (20,), 0.1),
        "fc1_w": g(ks[4], (50, 320), 0.05),
        "fc1_b": g(ks[5], (50,), 0.05),
        "fc2_w": g(ks[6], (10, 50), 0.1),
        "fc2_b": g(ks[7], (10,), 0.1),
    }


def _maxpool_nchw(x):
    N, C, H, W = x.shape
    return x.reshape(N, C, H // 2, 2, W // 2, 2).max(axis=(3, 5))


def reference_forward(x, p):
    """Pure-JAX eval-mode reference matching the PyTorch forward."""
    hp = jax.lax.Precision.HIGHEST
    h = jax.lax.conv_general_dilated(x, p["conv1_w"], (1, 1), "VALID",
                                     dimension_numbers=("NCHW", "OIHW", "NCHW"),
                                     precision=hp) + p["conv1_b"][None, :, None, None]
    h = jnp.maximum(_maxpool_nchw(h), 0.0)
    h = jax.lax.conv_general_dilated(h, p["conv2_w"], (1, 1), "VALID",
                                     dimension_numbers=("NCHW", "OIHW", "NCHW"),
                                     precision=hp) + p["conv2_b"][None, :, None, None]
    h = jnp.maximum(_maxpool_nchw(h), 0.0)
    flat = h.reshape(h.shape[0], -1)                                     # NCHW flatten -> (N,320)
    z = jnp.maximum(jnp.dot(flat, p["fc1_w"].T, precision=hp) + p["fc1_b"], 0.0)
    return jnp.dot(z, p["fc2_w"].T, precision=hp) + p["fc2_b"]


if __name__ == "__main__":
    key = jax.random.PRNGKey(0)
    kx, kp = jax.random.split(key)
    # MNIST-shaped input: 28x28 is required so the flattened feature count is 320.
    x = jax.random.normal(kx, (2, 1, 28, 28), jnp.float32)
    params = init_params(kp)

    out = jax.block_until_ready(cnn_mnist_forward(x, params))
    ref = reference_forward(x, params)
    if not bool(jnp.allclose(out, ref, atol=2e-2, rtol=1e-2)):
        raise AssertionError(
            f"kernel/reference mismatch, max abs diff = {float(jnp.max(jnp.abs(out - ref)))}")
    print("KERNEL_OK")
</pallas_src>

<mosaic_0001>
module attributes {stable_mosaic.version = 11 : i64} {
  func.func @_cnn_mnist_kernel(%arg0: i32, %arg1: memref<28x8x28xf32, #tpu.memory_space<vmem>>, %arg2: memref<5x28x72xf32, #tpu.memory_space<vmem>>, %arg3: memref<1x72xf32, #tpu.memory_space<vmem>>, %arg4: memref<5x36x256xf32, #tpu.memory_space<vmem>>, %arg5: memref<1x256xf32, #tpu.memory_space<vmem>>, %arg6: memref<4x80x50xf32, #tpu.memory_space<vmem>>, %arg7: memref<1x50xf32, #tpu.memory_space<vmem>>, %arg8: memref<50x128xf32, #tpu.memory_space<vmem>>, %arg9: memref<1x128xf32, #tpu.memory_space<vmem>>, %arg10: memref<8x128xf32, #tpu.memory_space<vmem>>) attributes {dimension_semantics = [#tpu.dimension_semantics<parallel>], iteration_bounds = array<i64: 1>, scalar_prefetch = 0 : i64, scratch_operands = 0 : i64, tpu.core_type = #tpu.core_type<tc>, window_params = [{transform_indices = @transform_0, window_bounds = array<i64: 28, 8, 28>}, {pipeline_mode = #tpu.pipeline_mode<synchronous>, transform_indices = @transform_1, window_bounds = array<i64: 5, 28, 72>}, {pipeline_mode = #tpu.pipeline_mode<synchronous>, transform_indices = @transform_2, window_bounds = array<i64: 1, 72>}, {pipeline_mode = #tpu.pipeline_mode<synchronous>, transform_indices = @transform_3, window_bounds = array<i64: 5, 36, 256>}, {pipeline_mode = #tpu.pipeline_mode<synchronous>, transform_indices = @transform_4, window_bounds = array<i64: 1, 256>}, {pipeline_mode = #tpu.pipeline_mode<synchronous>, transform_indices = @transform_5, window_bounds = array<i64: 4, 80, 50>}, {pipeline_mode = #tpu.pipeline_mode<synchronous>, transform_indices = @transform_6, window_bounds = array<i64: 1, 50>}, {pipeline_mode = #tpu.pipeline_mode<synchronous>, transform_indices = @transform_7, window_bounds = array<i64: 50, 128>}, {pipeline_mode = #tpu.pipeline_mode<synchronous>, transform_indices = @transform_8, window_bounds = array<i64: 1, 128>}, {transform_indices = @transform_9, window_bounds = array<i64: 8, 128>}]} {
    %c0 = arith.constant 0 : index
    %c0_0 = arith.constant 0 : index
    %c0_1 = arith.constant 0 : index
    %0 = vector.load %arg1[%c0, %c0_0, %c0_1] : memref<28x8x28xf32, #tpu.memory_space<vmem>>, vector<28x8x28xf32>
    %cst = arith.constant 0.000000e+00 : f32
    %1 = vector.broadcast %cst : f32 to vector<192x72xf32>
    %2 = vector.extract_strided_slice %0 {offsets = [0, 0, 0], sizes = [24, 8, 28], strides = [1, 1, 1]} : vector<28x8x28xf32> to vector<24x8x28xf32>
    %3 = vector.shape_cast %2 : vector<24x8x28xf32> to vector<192x28xf32>
    %c0_2 = arith.constant 0 : index
    %c0_3 = arith.constant 0 : index
    %c0_4 = arith.constant 0 : index
    %4 = vector.load %arg2[%c0_2, %c0_3, %c0_4] : memref<5x28x72xf32, #tpu.memory_space<vmem>>, vector<1x28x72xf32>
    %5 = vector.shape_cast %4 : vector<1x28x72xf32> to vector<28x72xf32>
    %cst_5 = arith.constant dense<0.000000e+00> : vector<192x72xf32>
    %6 = tpu.matmul %3, %5, %cst_5 {dimension_numbers = #tpu.dot_dimension_numbers<[1], [0], [0], [1], [0, 0, 1, 1], [], []>} : vector<192x28xf32>, vector<28x72xf32>, vector<192x72xf32> -> vector<192x72xf32>
    %7 = arith.addf %1, %6 : vector<192x72xf32>
    %8 = vector.extract_strided_slice %0 {offsets = [1, 0, 0], sizes = [24, 8, 28], strides = [1, 1, 1]} : vector<28x8x28xf32> to vector<24x8x28xf32>
    %9 = vector.shape_cast %8 : vector<24x8x28xf32> to vector<192x28xf32>
    %c1 = arith.constant 1 : index
    %c0_6 = arith.constant 0 : index
    %c0_7 = arith.constant 0 : index
    %10 = vector.load %arg2[%c1, %c0_6, %c0_7] : memref<5x28x72xf32, #tpu.memory_space<vmem>>, vector<1x28x72xf32>
    %11 = vector.shape_cast %10 : vector<1x28x72xf32> to vector<28x72xf32>
    %cst_8 = arith.constant dense<0.000000e+00> : vector<192x72xf32>
    %12 = tpu.matmul %9, %11, %cst_8 {dimension_numbers = #tpu.dot_dimension_numbers<[1], [0], [0], [1], [0, 0, 1, 1], [], []>} : vector<192x28xf32>, vector<28x72xf32>, vector<192x72xf32> -> vector<192x72xf32>
    %13 = arith.addf %7, %12 : vector<192x72xf32>
    %14 = vector.extract_strided_slice %0 {offsets = [2, 0, 0], sizes = [24, 8, 28], strides = [1, 1, 1]} : vector<28x8x28xf32> to vector<24x8x28xf32>
    %15 = vector.shape_cast %14 : vector<24x8x28xf32> to vector<192x28xf32>
    %c2 = arith.constant 2 : index
    %c0_9 = arith.constant 0 : index
    %c0_10 = arith.constant 0 : index
    %16 = vector.load %arg2[%c2, %c0_9, %c0_10] : memref<5x28x72xf32, #tpu.memory_space<vmem>>, vector<1x28x72xf32>
    %17 = vector.shape_cast %16 : vector<1x28x72xf32> to vector<28x72xf32>
    %cst_11 = arith.constant dense<0.000000e+00> : vector<192x72xf32>
    %18 = tpu.matmul %15, %17, %cst_11 {dimension_numbers = #tpu.dot_dimension_numbers<[1], [0], [0], [1], [0, 0, 1, 1], [], []>} : vector<192x28xf32>, vector<28x72xf32>, vector<192x72xf32> -> vector<192x72xf32>
    %19 = arith.addf %13, %18 : vector<192x72xf32>
    %20 = vector.extract_strided_slice %0 {offsets = [3, 0, 0], sizes = [24, 8, 28], strides = [1, 1, 1]} : vector<28x8x28xf32> to vector<24x8x28xf32>
    %21 = vector.shape_cast %20 : vector<24x8x28xf32> to vector<192x28xf32>
    %c3 = arith.constant 3 : index
    %c0_12 = arith.constant 0 : index
    %c0_13 = arith.constant 0 : index
    %22 = vector.load %arg2[%c3, %c0_12, %c0_13] : memref<5x28x72xf32, #tpu.memory_space<vmem>>, vector<1x28x72xf32>
    %23 = vector.shape_cast %22 : vector<1x28x72xf32> to vector<28x72xf32>
    %cst_14 = arith.constant dense<0.000000e+00> : vector<192x72xf32>
    %24 = tpu.matmul %21, %23, %cst_14 {dimension_numbers = #tpu.dot_dimension_numbers<[1], [0], [0], [1], [0, 0, 1, 1], [], []>} : vector<192x28xf32>, vector<28x72xf32>, vector<192x72xf32> -> vector<192x72xf32>
    %25 = arith.addf %19, %24 : vector<192x72xf32>
    %26 = vector.extract_strided_slice %0 {offsets = [4, 0, 0], sizes = [24, 8, 28], strides = [1, 1, 1]} : vector<28x8x28xf32> to vector<24x8x28xf32>
    %27 = vector.shape_cast %26 : vector<24x8x28xf32> to vector<192x28xf32>
    %c4 = arith.constant 4 : index
    %c0_15 = arith.constant 0 : index
    %c0_16 = arith.constant 0 : index
    %28 = vector.load %arg2[%c4, %c0_15, %c0_16] : memref<5x28x72xf32, #tpu.memory_space<vmem>>, vector<1x28x72xf32>
    %29 = vector.shape_cast %28 : vector<1x28x72xf32> to vector<28x72xf32>
    %cst_17 = arith.constant dense<0.000000e+00> : vector<192x72xf32>
    %30 = tpu.matmul %27, %29, %cst_17 {dimension_numbers = #tpu.dot_dimension_numbers<[1], [0], [0], [1], [0, 0, 1, 1], [], []>} : vector<192x28xf32>, vector<28x72xf32>, vector<192x72xf32> -> vector<192x72xf32>
    %31 = arith.addf %25, %30 : vector<192x72xf32>
    %c0_18 = arith.constant 0 : index
    %c0_19 = arith.constant 0 : index
    %32 = vector.load %arg3[%c0_18, %c0_19] : memref<1x72xf32, #tpu.memory_space<vmem>>, vector<1x72xf32>
    %33 = vector.broadcast %32 : vector<1x72xf32> to vector<192x72xf32>
    %34 = arith.addf %31, %33 : vector<192x72xf32>
    %35 = vector.shape_cast %34 : vector<192x72xf32> to vector<12x2x8x72xf32>
    %36 = vector.extract_strided_slice %35 {offsets = [0, 0, 0, 0], sizes = [12, 1, 8, 72], strides = [1, 1, 1, 1]} : vector<12x2x8x72xf32> to vector<12x1x8x72xf32>
    %37 = vector.shape_cast %36 : vector<12x1x8x72xf32> to vector<12x8x72xf32>
    %38 = vector.extract_strided_slice %35 {offsets = [0, 1, 0, 0], sizes = [12, 1, 8, 72], strides = [1, 1, 1, 1]} : vector<12x2x8x72xf32> to vector<12x1x8x72xf32>
    %39 = vector.shape_cast %38 : vector<12x1x8x72xf32> to vector<12x8x72xf32>
    %40 = arith.maximumf %37, %39 : vector<12x8x72xf32>
    %41 = vector.extract_strided_slice %40 {offsets = [0, 0, 0], sizes = [12, 8, 36], strides = [1, 1, 1]} : vector<12x8x72xf32> to vector<12x8x36xf32>
    %42 = vector.extract_strided_slice %40 {offsets = [0, 0, 36], sizes = [12, 8, 36], strides = [1, 1, 1]} : vector<12x8x72xf32> to vector<12x8x36xf32>
    %43 = arith.maximumf %41, %42 : vector<12x8x36xf32>
    %cst_20 = arith.constant 0.000000e+00 : f32
    %44 = vector.broadcast %cst_20 : f32 to vector<12x8x36xf32>
    %45 = arith.maximumf %43, %44 : vector<12x8x36xf32>
    %cst_21 = arith.constant 0.000000e+00 : f32
    %46 = vector.broadcast %cst_21 : f32 to vector<64x256xf32>
    %47 = vector.extract_strided_slice %45 {offsets = [0, 0, 0], sizes = [8, 8, 36], strides = [1, 1, 1]} : vector<12x8x36xf32> to vector<8x8x36xf32>
    %48 = vector.shape_cast %47 : vector<8x8x36xf32> to vector<64x36xf32>
    %c0_22 = arith.constant 0 : index
    %c0_23 = arith.constant 0 : index
    %c0_24 = arith.constant 0 : index
    %49 = vector.load %arg4[%c0_22, %c0_23, %c0_24] : memref<5x36x256xf32, #tpu.memory_space<vmem>>, vector<1x36x256xf32>
    %50 = vector.shape_cast %49 : vector<1x36x256xf32> to vector<36x256xf32>
    %cst_25 = arith.constant dense<0.000000e+00> : vector<64x256xf32>
    %51 = tpu.matmul %48, %50, %cst_25 {dimension_numbers = #tpu.dot_dimension_numbers<[1], [0], [0], [1], [0, 0, 1, 1], [], []>} : vector<64x36xf32>, vector<36x256xf32>, vector<64x256xf32> -> vector<64x256xf32>
    %52 = arith.addf %46, %51 : vector<64x256xf32>
    %53 = vector.extract_strided_slice %45 {offsets = [1, 0, 0], sizes = [8, 8, 36], strides = [1, 1, 1]} : vector<12x8x36xf32> to vector<8x8x36xf32>
    %54 = vector.shape_cast %53 : vector<8x8x36xf32> to vector<64x36xf32>
    %c1_26 = arith.constant 1 : index
    %c0_27 = arith.constant 0 : index
    %c0_28 = arith.constant 0 : index
    %55 = vector.load %arg4[%c1_26, %c0_27, %c0_28] : memref<5x36x256xf32, #tpu.memory_space<vmem>>, vector<1x36x256xf32>
    %56 = vector.shape_cast %55 : vector<1x36x256xf32> to vector<36x256xf32>
    %cst_29 = arith.constant dense<0.000000e+00> : vector<64x256xf32>
    %57 = tpu.matmul %54, %56, %cst_29 {dimension_numbers = #tpu.dot_dimension_numbers<[1], [0], [0], [1], [0, 0, 1, 1], [], []>} : vector<64x36xf32>, vector<36x256xf32>, vector<64x256xf32> -> vector<64x256xf32>
    %58 = arith.addf %52, %57 : vector<64x256xf32>
    %59 = vector.extract_strided_slice %45 {offsets = [2, 0, 0], sizes = [8, 8, 36], strides = [1, 1, 1]} : vector<12x8x36xf32> to vector<8x8x36xf32>
    %60 = vector.shape_cast %59 : vector<8x8x36xf32> to vector<64x36xf32>
    %c2_30 = arith.constant 2 : index
    %c0_31 = arith.constant 0 : index
    %c0_32 = arith.constant 0 : index
    %61 = vector.load %arg4[%c2_30, %c0_31, %c0_32] : memref<5x36x256xf32, #tpu.memory_space<vmem>>, vector<1x36x256xf32>
    %62 = vector.shape_cast %61 : vector<1x36x256xf32> to vector<36x256xf32>
    %cst_33 = arith.constant dense<0.000000e+00> : vector<64x256xf32>
    %63 = tpu.matmul %60, %62, %cst_33 {dimension_numbers = #tpu.dot_dimension_numbers<[1], [0], [0], [1], [0, 0, 1, 1], [], []>} : vector<64x36xf32>, vector<36x256xf32>, vector<64x256xf32> -> vector<64x256xf32>
    %64 = arith.addf %58, %63 : vector<64x256xf32>
    %65 = vector.extract_strided_slice %45 {offsets = [3, 0, 0], sizes = [8, 8, 36], strides = [1, 1, 1]} : vector<12x8x36xf32> to vector<8x8x36xf32>
    %66 = vector.shape_cast %65 : vector<8x8x36xf32> to vector<64x36xf32>
    %c3_34 = arith.constant 3 : index
    %c0_35 = arith.constant 0 : index
    %c0_36 = arith.constant 0 : index
    %67 = vector.load %arg4[%c3_34, %c0_35, %c0_36] : memref<5x36x256xf32, #tpu.memory_space<vmem>>, vector<1x36x256xf32>
    %68 = vector.shape_cast %67 : vector<1x36x256xf32> to vector<36x256xf32>
    %cst_37 = arith.constant dense<0.000000e+00> : vector<64x256xf32>
    %69 = tpu.matmul %66, %68, %cst_37 {dimension_numbers = #tpu.dot_dimension_numbers<[1], [0], [0], [1], [0, 0, 1, 1], [], []>} : vector<64x36xf32>, vector<36x256xf32>, vector<64x256xf32> -> vector<64x256xf32>
    %70 = arith.addf %64, %69 : vector<64x256xf32>
    %71 = vector.extract_strided_slice %45 {offsets = [4, 0, 0], sizes = [8, 8, 36], strides = [1, 1, 1]} : vector<12x8x36xf32> to vector<8x8x36xf32>
    %72 = vector.shape_cast %71 : vector<8x8x36xf32> to vector<64x36xf32>
    %c4_38 = arith.constant 4 : index
    %c0_39 = arith.constant 0 : index
    %c0_40 = arith.constant 0 : index
    %73 = vector.load %arg4[%c4_38, %c0_39, %c0_40] : memref<5x36x256xf32, #tpu.memory_space<vmem>>, vector<1x36x256xf32>
    %74 = vector.shape_cast %73 : vector<1x36x256xf32> to vector<36x256xf32>
    %cst_41 = arith.constant dense<0.000000e+00> : vector<64x256xf32>
    %75 = tpu.matmul %72, %74, %cst_41 {dimension_numbers = #tpu.dot_dimension_numbers<[1], [0], [0], [1], [0, 0, 1, 1], [], []>} : vector<64x36xf32>, vector<36x256xf32>, vector<64x256xf32> -> vector<64x256xf32>
    %76 = arith.addf %70, %75 : vector<64x256xf32>
    %c0_42 = arith.constant 0 : index
    %c0_43 = arith.constant 0 : index
    %77 = vector.load %arg5[%c0_42, %c0_43] : memref<1x256xf32, #tpu.memory_space<vmem>>, vector<1x256xf32>
    %78 = vector.broadcast %77 : vector<1x256xf32> to vector<64x256xf32>
    %79 = arith.addf %76, %78 : vector<64x256xf32>
    %80 = vector.shape_cast %79 : vector<64x256xf32> to vector<4x2x8x256xf32>
    %81 = vector.extract_strided_slice %80 {offsets = [0, 0, 0, 0], sizes = [4, 1, 8, 256], strides = [1, 1, 1, 1]} : vector<4x2x8x256xf32> to vector<4x1x8x256xf32>
    %82 = vector.shape_cast %81 : vector<4x1x8x256xf32> to vector<4x8x256xf32>
    %83 = vector.extract_strided_slice %80 {offsets = [0, 1, 0, 0], sizes = [4, 1, 8, 256], strides = [1, 1, 1, 1]} : vector<4x2x8x256xf32> to vector<4x1x8x256xf32>
    %84 = vector.shape_cast %83 : vector<4x1x8x256xf32> to vector<4x8x256xf32>
    %85 = arith.maximumf %82, %84 : vector<4x8x256xf32>
    %86 = vector.extract_strided_slice %85 {offsets = [0, 0, 0], sizes = [4, 8, 80], strides = [1, 1, 1]} : vector<4x8x256xf32> to vector<4x8x80xf32>
    %87 = vector.extract_strided_slice %85 {offsets = [0, 0, 128], sizes = [4, 8, 80], strides = [1, 1, 1]} : vector<4x8x256xf32> to vector<4x8x80xf32>
    %88 = arith.maximumf %86, %87 : vector<4x8x80xf32>
    %cst_44 = arith.constant 0.000000e+00 : f32
    %89 = vector.broadcast %cst_44 : f32 to vector<4x8x80xf32>
    %90 = arith.maximumf %88, %89 : vector<4x8x80xf32>
    %cst_45 = arith.constant 0.000000e+00 : f32
    %91 = vector.broadcast %cst_45 : f32 to vector<8x50xf32>
    %92 = vector.extract_strided_slice %90 {offsets = [0, 0, 0], sizes = [1, 8, 80], strides = [1, 1, 1]} : vector<4x8x80xf32> to vector<1x8x80xf32>
    %93 = vector.shape_cast %92 : vector<1x8x80xf32> to vector<8x80xf32>
    %c0_46 = arith.constant 0 : index
    %c0_47 = arith.constant 0 : index
    %c0_48 = arith.constant 0 : index
    %94 = vector.load %arg6[%c0_46, %c0_47, %c0_48] : memref<4x80x50xf32, #tpu.memory_space<vmem>>, vector<1x80x50xf32>
    %95 = vector.shape_cast %94 : vector<1x80x50xf32> to vector<80x50xf32>
    %cst_49 = arith.constant dense<0.000000e+00> : vector<8x50xf32>
    %96 = tpu.matmul %93, %95, %cst_49 {dimension_numbers = #tpu.dot_dimension_numbers<[1], [0], [0], [1], [0, 0, 1, 1], [], []>} : vector<8x80xf32>, vector<80x50xf32>, vector<8x50xf32> -> vector<8x50xf32>
    %97 = arith.addf %91, %96 : vector<8x50xf32>
    %98 = vector.extract_strided_slice %90 {offsets = [1, 0, 0], sizes = [1, 8, 80], strides = [1, 1, 1]} : vector<4x8x80xf32> to vector<1x8x80xf32>
    %99 = vector.shape_cast %98 : vector<1x8x80xf32> to vector<8x80xf32>
    %c1_50 = arith.constant 1 : index
    %c0_51 = arith.constant 0 : index
    %c0_52 = arith.constant 0 : index
    %100 = vector.load %arg6[%c1_50, %c0_51, %c0_52] : memref<4x80x50xf32, #tpu.memory_space<vmem>>, vector<1x80x50xf32>
    %101 = vector.shape_cast %100 : vector<1x80x50xf32> to vector<80x50xf32>
    %cst_53 = arith.constant dense<0.000000e+00> : vector<8x50xf32>
    %102 = tpu.matmul %99, %101, %cst_53 {dimension_numbers = #tpu.dot_dimension_numbers<[1], [0], [0], [1], [0, 0, 1, 1], [], []>} : vector<8x80xf32>, vector<80x50xf32>, vector<8x50xf32> -> vector<8x50xf32>
    %103 = arith.addf %97, %102 : vector<8x50xf32>
    %104 = vector.extract_strided_slice %90 {offsets = [2, 0, 0], sizes = [1, 8, 80], strides = [1, 1, 1]} : vector<4x8x80xf32> to vector<1x8x80xf32>
    %105 = vector.shape_cast %104 : vector<1x8x80xf32> to vector<8x80xf32>
    %c2_54 = arith.constant 2 : index
    %c0_55 = arith.constant 0 : index
    %c0_56 = arith.constant 0 : index
    %106 = vector.load %arg6[%c2_54, %c0_55, %c0_56] : memref<4x80x50xf32, #tpu.memory_space<vmem>>, vector<1x80x50xf32>
    %107 = vector.shape_cast %106 : vector<1x80x50xf32> to vector<80x50xf32>
    %cst_57 = arith.constant dense<0.000000e+00> : vector<8x50xf32>
    %108 = tpu.matmul %105, %107, %cst_57 {dimension_numbers = #tpu.dot_dimension_numbers<[1], [0], [0], [1], [0, 0, 1, 1], [], []>} : vector<8x80xf32>, vector<80x50xf32>, vector<8x50xf32> -> vector<8x50xf32>
    %109 = arith.addf %103, %108 : vector<8x50xf32>
    %110 = vector.extract_strided_slice %90 {offsets = [3, 0, 0], sizes = [1, 8, 80], strides = [1, 1, 1]} : vector<4x8x80xf32> to vector<1x8x80xf32>
    %111 = vector.shape_cast %110 : vector<1x8x80xf32> to vector<8x80xf32>
    %c3_58 = arith.constant 3 : index
    %c0_59 = arith.constant 0 : index
    %c0_60 = arith.constant 0 : index
    %112 = vector.load %arg6[%c3_58, %c0_59, %c0_60] : memref<4x80x50xf32, #tpu.memory_space<vmem>>, vector<1x80x50xf32>
    %113 = vector.shape_cast %112 : vector<1x80x50xf32> to vector<80x50xf32>
    %cst_61 = arith.constant dense<0.000000e+00> : vector<8x50xf32>
    %114 = tpu.matmul %111, %113, %cst_61 {dimension_numbers = #tpu.dot_dimension_numbers<[1], [0], [0], [1], [0, 0, 1, 1], [], []>} : vector<8x80xf32>, vector<80x50xf32>, vector<8x50xf32> -> vector<8x50xf32>
    %115 = arith.addf %109, %114 : vector<8x50xf32>
    %c0_62 = arith.constant 0 : index
    %c0_63 = arith.constant 0 : index
    %116 = vector.load %arg7[%c0_62, %c0_63] : memref<1x50xf32, #tpu.memory_space<vmem>>, vector<1x50xf32>
    %117 = vector.broadcast %116 : vector<1x50xf32> to vector<8x50xf32>
    %118 = arith.addf %115, %117 : vector<8x50xf32>
    %cst_64 = arith.constant 0.000000e+00 : f32
    %119 = vector.broadcast %cst_64 : f32 to vector<8x50xf32>
    %120 = arith.maximumf %118, %119 : vector<8x50xf32>
    %c0_65 = arith.constant 0 : index
    %c0_66 = arith.constant 0 : index
    %121 = vector.load %arg8[%c0_65, %c0_66] : memref<50x128xf32, #tpu.memory_space<vmem>>, vector<50x128xf32>
    %cst_67 = arith.constant dense<0.000000e+00> : vector<8x128xf32>
    %122 = tpu.matmul %120, %121, %cst_67 {dimension_numbers = #tpu.dot_dimension_numbers<[1], [0], [0], [1], [0, 0, 1, 1], [], []>} : vector<8x50xf32>, vector<50x128xf32>, vector<8x128xf32> -> vector<8x128xf32>
    %c0_68 = arith.constant 0 : index
    %c0_69 = arith.constant 0 : index
    %123 = vector.load %arg9[%c0_68, %c0_69] : memref<1x128xf32, #tpu.memory_space<vmem>>, vector<1x128xf32>
    %124 = vector.broadcast %123 : vector<1x128xf32> to vector<8x128xf32>
    %125 = arith.addf %122, %124 : vector<8x128xf32>
    %c0_70 = arith.constant 0 : index
    %c0_71 = arith.constant 0 : index
    %126 = vector.load %arg10[%c0_70, %c0_71] : memref<8x128xf32, #tpu.memory_space<vmem>>, vector<8x128xf32>
    tpu.vector_store %arg10[%c0_70, %c0_71], %125 {strides = array<i32>} : memref<8x128xf32, #tpu.memory_space<vmem>>, vector<8x128xf32>,
    return
  }
  func.func @transform_0(%arg0: i32) -> (i32, i32, i32) {
    %c0_i32 = arith.constant 0 : i32
    %c0_i32_0 = arith.constant 0 : i32
    %c0_i32_1 = arith.constant 0 : i32
    return %c0_i32, %arg0, %c0_i32_0 : i32, i32, i32
  }
  func.func @transform_1(%arg0: i32) -> (i32, i32, i32) {
    %c0_i32 = arith.constant 0 : i32
    %c0_i32_0 = arith.constant 0 : i32
    %c0_i32_1 = arith.constant 0 : i32
    %c0_i32_2 = arith.constant 0 : i32
    return %c0_i32, %c0_i32_0, %c0_i32_1 : i32, i32, i32
  }
  func.func @transform_2(%arg0: i32) -> (i32, i32) {
    %c0_i32 = arith.constant 0 : i32
    %c0_i32_0 = arith.constant 0 : i32
    %c0_i32_1 = arith.constant 0 : i32
    return %c0_i32, %c0_i32_0 : i32, i32
  }
  func.func @transform_3(%arg0: i32) -> (i32, i32, i32) {
    %c0_i32 = arith.constant 0 : i32
    %c0_i32_0 = arith.constant 0 : i32
    %c0_i32_1 = arith.constant 0 : i32
    %c0_i32_2 = arith.constant 0 : i32
    return %c0_i32, %c0_i32_0, %c0_i32_1 : i32, i32, i32
  }
  func.func @transform_4(%arg0: i32) -> (i32, i32) {
    %c0_i32 = arith.constant 0 : i32
    %c0_i32_0 = arith.constant 0 : i32
    %c0_i32_1 = arith.constant 0 : i32
    return %c0_i32, %c0_i32_0 : i32, i32
  }
  func.func @transform_5(%arg0: i32) -> (i32, i32, i32) {
    %c0_i32 = arith.constant 0 : i32
    %c0_i32_0 = arith.constant 0 : i32
    %c0_i32_1 = arith.constant 0 : i32
    %c0_i32_2 = arith.constant 0 : i32
    return %c0_i32, %c0_i32_0, %c0_i32_1 : i32, i32, i32
  }
  func.func @transform_6(%arg0: i32) -> (i32, i32) {
    %c0_i32 = arith.constant 0 : i32
    %c0_i32_0 = arith.constant 0 : i32
    %c0_i32_1 = arith.constant 0 : i32
    return %c0_i32, %c0_i32_0 : i32, i32
  }
  func.func @transform_7(%arg0: i32) -> (i32, i32) {
    %c0_i32 = arith.constant 0 : i32
    %c0_i32_0 = arith.constant 0 : i32
    %c0_i32_1 = arith.constant 0 : i32
    return %c0_i32, %c0_i32_0 : i32, i32
  }
  func.func @transform_8(%arg0: i32) -> (i32, i32) {
    %c0_i32 = arith.constant 0 : i32
    %c0_i32_0 = arith.constant 0 : i32
    %c0_i32_1 = arith.constant 0 : i32
    return %c0_i32, %c0_i32_0 : i32, i32
  }
  func.func @transform_9(%arg0: i32) -> (i32, i32) {
    %c0_i32 = arith.constant 0 : i32
    %c0_i32_0 = arith.constant 0 : i32
    return %arg0, %c0_i32 : i32, i32
  }
}

</mosaic_0001>

<llo_original>
// kernel: tpu_custom_call.1
$region0: #{tpu_custom_call.1}
  #allocation0 [shape = 'u32[]', space=smem, size = 0x4, offset = 0x4, fixed_abs, tag = 'smem constant byte address 0x4 - core index']
  #allocation1 [shape = 'u32[144,128]{1,0:T(1,128)}', space=vmem, size = 0x12000, scoped, tag = 'internal scratch']
  %s0 = inlined_call_operand.hbm [shape: f32[28,8,28], index: 0, kind: input, shape index: {}]
  %s1 = inlined_call_operand.hbm [shape: f32[5,28,72], index: 1, kind: input, shape index: {}]
  %s2 = inlined_call_operand.vmem [shape: f32[1,72], index: 2, kind: input, shape index: {}]
  %s3 = inlined_call_operand.vmem [shape: f32[5,36,256], index: 3, kind: input, shape index: {}]
  %s4 = inlined_call_operand.vmem [shape: f32[1,256], index: 4, kind: input, shape index: {}]
  %s5 = inlined_call_operand.vmem [shape: f32[4,80,50], index: 5, kind: input, shape index: {}]
  %s6 = inlined_call_operand.vmem [shape: f32[1,50], index: 6, kind: input, shape index: {}]
  %s7 = inlined_call_operand.vmem [shape: f32[50,128], index: 7, kind: input, shape index: {}]
  %s8 = inlined_call_operand.vmem [shape: f32[1,128], index: 8, kind: input, shape index: {}]
  %s9 = inlined_call_operand.hbm [shape: f32[8,128], index: 9, kind: output, shape index: {}]
  %s10 = sld [smem:[#allocation0]]
  $region54: #{tpu_custom_call.1} parent=0
    _
  %s12 = ssub.s32 1, %s10
  %s13 = scalar_select 0, %s12, %s10
  $region1: #{tpu_custom_call.1} parent=0
    #allocation2 [shape = 'u8[114688]{0}', space=vmem, size = 0x1c000, scoped, tag = 'input window, operand 0, single buffered']
    #allocation3 [shape = 's32[1]{0}', space=sflag, size = 0x4, scoped, tag = 'scoped memory for tpu_custom_call.1']
    #allocation4 [shape = 's32[1]{0}', space=sflag, size = 0x4, scoped, tag = 'scoped memory for tpu_custom_call.1']
    #allocation5 [shape = 'u8[81920]{0}', space=vmem, size = 0x14000, scoped, tag = 'input window, operand 1, single buffered']
    #allocation6 [shape = 's32[1]{0}', space=sflag, size = 0x4, scoped, tag = 'scoped memory for tpu_custom_call.1']
    #allocation7 [shape = 'u8[4096]{0}', space=vmem, size = 0x1000, scoped, tag = 'output window, operand 0, single buffered']
    %14 = vsyncpa [#allocation3], 0
    %15 = vsyncpa [#allocation6], 0
    %16 = vsyncpa [#allocation4], 0
    // Predicated region
    $region2: #{tpu_custom_call.1} parent=1 // pred_check
      _
    $region3: #{tpu_custom_call.1} parent=1 // pred_check_branch
      %18 = sbr.rel (0) target = $region5
    $region4: #{tpu_custom_call.1} parent=1 // pred_region
      %s20 = ssub.s32 3584, 3584
      %21 = vsyncadd [#allocation3], %s20
      %s22 = sshll.u32 [#allocation2], 4
      %s23 = int_to_ptr.vmem [resolvable:$true] %s22
      %28 = dma.hbm_to_vmem [thread:$0]  %s0, 3584, %s23, [#allocation3], 128, 128, 8
    $region5: #{tpu_custom_call.1} parent=1 // pred_fallthru
      _
    // Predicated region
    $region6: #{tpu_custom_call.1} parent=1 // pred_check
      _
    $region7: #{tpu_custom_call.1} parent=1 // pred_check_branch
      %30 = sbr.rel (0) target = $region9
    $region8: #{tpu_custom_call.1} parent=1 // pred_region
      %s32 = ssub.s32 2560, 2560
      %33 = vsyncadd [#allocation6], %s32
      %s34 = sshll.u32 [#allocation5], 4
      %s35 = int_to_ptr.vmem [resolvable:$true] %s34
      %40 = dma.hbm_to_vmem [thread:$0]  %s1, 2560, %s35, [#allocation6], 128, 128, 8
    $region9: #{tpu_custom_call.1} parent=1 // pred_fallthru
      _
    // Predicated region
    $region10: #{tpu_custom_call.1} parent=1 // pred_check
      _
    $region11: #{tpu_custom_call.1} parent=1 // pred_check_branch
      %42 = sbr.rel (0) target = $region13
    $region12: #{tpu_custom_call.1} parent=1 // pred_region
      _
    $region13: #{tpu_custom_call.1} parent=1 // pred_fallthru
      _
    // Predicated region
    $region14: #{tpu_custom_call.1} parent=1 // pred_check
      _
    $region15: #{tpu_custom_call.1} parent=1 // pred_check_branch
      %44 = sbr.rel (0) target = $region17
    $region16: #{tpu_custom_call.1} parent=1 // pred_region
      _
    $region17: #{tpu_custom_call.1} parent=1 // pred_fallthru
      _
    // Predicated region
    $region18: #{tpu_custom_call.1} parent=1 // pred_check
      _
    $region19: #{tpu_custom_call.1} parent=1 // pred_check_branch
      %46 = sbr.rel (0) target = $region21
    $region20: #{tpu_custom_call.1} parent=1 // pred_region
      _
    $region21: #{tpu_custom_call.1} parent=1 // pred_fallthru
      _
    // Predicated region
    $region22: #{tpu_custom_call.1} parent=1 // pred_check
      _
    $region23: #{tpu_custom_call.1} parent=1 // pred_check_branch
      %48 = sbr.rel (0) target = $region25
    $region24: #{tpu_custom_call.1} parent=1 // pred_region
      _
    $region25: #{tpu_custom_call.1} parent=1 // pred_fallthru
      _
    // Predicated region
    $region26: #{tpu_custom_call.1} parent=1 // pred_check
      _
    $region27: #{tpu_custom_call.1} parent=1 // pred_check_branch
      %50 = sbr.rel (0) target = $region29
    $region28: #{tpu_custom_call.1} parent=1 // pred_region
      _
    $region29: #{tpu_custom_call.1} parent=1 // pred_fallthru
      _
    // Predicated region
    $region30: #{tpu_custom_call.1} parent=1 // pred_check
      _
    $region31: #{tpu_custom_call.1} parent=1 // pred_check_branch
      %52 = sbr.rel (0) target = $region33
    $region32: #{tpu_custom_call.1} parent=1 // pred_region
      _
    $region33: #{tpu_custom_call.1} parent=1 // pred_fallthru
      _
    // Predicated region
    $region34: #{tpu_custom_call.1} parent=1 // pred_check
      _
    $region35: #{tpu_custom_call.1} parent=1 // pred_check_branch
      %54 = sbr.rel (0) target = $region37
    $region36: #{tpu_custom_call.1} parent=1 // pred_region
      _
    $region37: #{tpu_custom_call.1} parent=1 // pred_fallthru
      _
    // Predicated region
    $region38: #{tpu_custom_call.1} parent=1 // pred_check
      _
    $region39: #{tpu_custom_call.1} parent=1 // pred_check_branch
      %56 = sbr.rel (0) target = $region41
    $region40: #{tpu_custom_call.1} parent=1 // pred_region
      %57 = dma.done [#allocation3], 3584
    $region41: #{tpu_custom_call.1} parent=1 // pred_fallthru
      _
    // Predicated region
    $region42: #{tpu_custom_call.1} parent=1 // pred_check
      _
    $region43: #{tpu_custom_call.1} parent=1 // pred_check_branch
      %59 = sbr.rel (0) target = $region45
    $region44: #{tpu_custom_call.1} parent=1 // pred_region
      %60 = dma.done [#allocation6], 2560
    $region45: #{tpu_custom_call.1} parent=1 // pred_fallthru
      _
    %v61 = vld [vmem:[#allocation2] sm:$0xff]
    %v62 = vld [vmem:[#allocation2 + $0x8] sm:$0xff]
    %v63 = vld [vmem:[#allocation2 + $0x10] sm:$0xff]
    %v64 = vld [vmem:[#allocation2 + $0x18] sm:$0xff]
    %v65 = vld [vmem:[#allocation2 + $0x20] sm:$0xff]
    %v66 = vld [vmem:[#allocation2 + $0x28] sm:$0xff]
    %v67 = vld [vmem:[#allocation2 + $0x30] sm:$0xff]
    %v68 = vld [vmem:[#allocation2 + $0x38] sm:$0xff]
    %v69 = vld [vmem:[#allocation2 + $0x40] sm:$0xff]
    %v70 = vld [vmem:[#allocation2 + $0x48] sm:$0xff]
    %v71 = vld [vmem:[#allocation2 + $0x50] sm:$0xff]
    %v72 = vld [vmem:[#allocation2 + $0x58] sm:$0xff]
    %v73 = vld [vmem:[#allocation2 + $0x60] sm:$0xff]
    %v74 = vld [vmem:[#allocation2 + $0x68] sm:$0xff]
    %v75 = vld [vmem:[#allocation2 + $0x70] sm:$0xff]
    %v76 = vld [vmem:[#allocation2 + $0x78] sm:$0xff]
    %v77 = vld [vmem:[#allocation2 + $0x80] sm:$0xff]
    %v78 = vld [vmem:[#allocation2 + $0x88] sm:$0xff]
    %v79 = vld [vmem:[#allocation2 + $0x90] sm:$0xff]
    %v80 = vld [vmem:[#allocation2 + $0x98] sm:$0xff]
    %v81 = vld [vmem:[#allocation2 + $0xa0] sm:$0xff]
    %v82 = vld [vmem:[#allocation2 + $0xa8] sm:$0xff]
    %v83 = vld [vmem:[#allocation2 + $0xb0] sm:$0xff]
    %v84 = vld [vmem:[#allocation2 + $0xb8] sm:$0xff]
    %v85 = vld [vmem:[#allocation2 + $0xc0] sm:$0xff]
    %v86 = vld [vmem:[#allocation2 + $0xc8] sm:$0xff]
    %v87 = vld [vmem:[#allocation2 + $0xd0] sm:$0xff]
    %v88 = vld [vmem:[#allocation2 + $0xd8] sm:$0xff]
    %v89 = vld [vmem:[#allocation5] sm:$0xff]
    %v90 = vld [vmem:[#allocation5 + $0x8] sm:$0xff]
    %v91 = vld [vmem:[#allocation5 + $0x10] sm:$0xff]
    %v92 = vld [vmem:[#allocation5 + $0x18] sm:$0xf]
    %s93 = scalar_lea.vmem [#allocation5], 32
    %v94 = vld [vmem:[%s93] sm:$0xff]
    %v95 = vld [vmem:[%s93 + $0x8] sm:$0xff]
    %v96 = vld [vmem:[%s93 + $0x10] sm:$0xff]
    %v97 = vld [vmem:[%s93 + $0x18] sm:$0xf]
    %vm98 = vcmask 228352
    %v100 = vsel %vm98, %v62, 0
    %v103 = vsel %vm98, %v63, 0
    %v106 = vsel %vm98, %v64, 0
    %v109 = vsel %vm98, %v65, 0
    %v112 = vsel %vm98, %v66, 0
    %v115 = vsel %vm98, %v67, 0
    %v118 = vsel %vm98, %v68, 0
    %v121 = vsel %vm98, %v69, 0
    %v124 = vsel %vm98, %v70, 0
    %v127 = vsel %vm98, %v71, 0
    %v130 = vsel %vm98, %v72, 0
    %v133 = vsel %vm98, %v73, 0
    %v136 = vsel %vm98, %v74, 0
    %v139 = vsel %vm98, %v75, 0
    %v142 = vsel %vm98, %v76, 0
    %v145 = vsel %vm98, %v77, 0
    %v148 = vsel %vm98, %v78, 0
    %v151 = vsel %vm98, %v79, 0
    %v154 = vsel %vm98, %v80, 0
    %v157 = vsel %vm98, %v81, 0
    %v160 = vsel %vm98, %v82, 0
    %v163 = vsel %vm98, %v83, 0
    %v166 = vsel %vm98, %v84, 0
    %v169 = vsel %vm98, %v85, 0
    %vm171 = vcmask 1043456
    %v173 = vsel %vm171, %v97, 0
    %175 = vmatprep.subr.mxu0 0.0
    %176 = vmatpush1.msra.mxu0 %v94
    %177 = vmatprep.subr.mxu0 0.0
    %178 = vmatpush1.msra.mxu0 %v95
    %179 = vmatprep.subr.mxu0 0.0
    %180 = vmatpush1.msra.mxu0 %v96
    %181 = vmatprep.subr.mxu0 0.0
    %182 = vmatpush1.msra.mxu0 %v173
    %183 = vmatprep.subr.mxu0 0.0
    %184 = vmatpush1.msra.mxu0 0.0
    %185 = vmatprep.subr.mxu0 0.0
    %186 = vmatpush1.msra.mxu0 0.0
    %187 = vmatprep.subr.mxu0 0.0
    %188 = vmatpush1.msra.mxu0 0.0
    %189 = vmatprep.subr.mxu0 0.0
    %190 = vmatpush1.msra.mxu0 0.0
    %191 = vmatprep.subr.mxu0 0.0
    %192 = vmatpush1.msra.mxu0 0.0
    %193 = vmatprep.subr.mxu0 0.0
    %194 = vmatpush1.msra.mxu0 0.0
    %195 = vmatprep.subr.mxu0 0.0
    %196 = vmatpush1.msra.mxu0 0.0
    %197 = vmatprep.subr.mxu0 0.0
    %198 = vmatpush1.msra.mxu0 0.0
    %199 = vmatprep.subr.mxu0 0.0
    %200 = vmatpush1.msra.mxu0 0.0
    %201 = vmatprep.subr.mxu0 0.0
    %202 = vmatpush1.msra.mxu0 0.0
    %203 = vmatprep.subr.mxu0 0.0
    %204 = vmatpush1.msra.mxu0 0.0
    %205 = vmatprep.subr.mxu0 0.0
    %206 = vmatpush1.msra.mxu0 0.0
    %207 = vmatprep.subr.mxu0 0.0
    %208 = vmatpush1.msra.mxu0 0.0
    %209 = vmatprep.subr.mxu0 0.0
    %210 = vmatpush1.msra.mxu0 0.0
    %211 = vmatprep.subr.mxu0 0.0
    %212 = vmatpush1.msra.mxu0 0.0
    %213 = vmatprep.subr.mxu0 0.0
    %214 = vmatpush1.msra.mxu0 0.0
    %215 = vmatprep.subr.mxu0 0.0
    %216 = vmatpush1.msra.mxu0 0.0
    %217 = vmatprep.subr.mxu0 0.0
    %218 = vmatpush1.msra.mxu0 0.0
    %219 = vmatprep.subr.mxu0 0.0
    %220 = vmatpush1.msra.mxu0 0.0
    %221 = vmatprep.subr.mxu0 0.0
    %222 = vmatpush1.msra.mxu0 0.0
    %223 = vmatprep.subr.mxu0 0.0
    %224 = vmatpush1.msra.mxu0 0.0
    %225 = vmatprep.subr.mxu0 0.0
    %226 = vmatpush1.msra.mxu0 0.0
    %227 = vmatprep.subr.mxu0 0.0
    %228 = vmatpush1.msra.mxu0 0.0
    %229 = vmatprep.subr.mxu0 0.0
    %230 = vmatpush1.msra.mxu0 0.0
    %231 = vmatprep.subr.mxu0 0.0
    %232 = vmatpush1.msra.mxu0 0.0
    %233 = vmatprep.subr.mxu0 0.0
    %234 = vmatpush1.msra.mxu0 0.0
    %235 = vmatprep.subr.mxu0 0.0
    %236 = vmatpush1.msra.mxu0 0.0
    %237 = vmatprep.subr.mxu0 0.0
    %238 = vmatpush1.msra.mxu0 0.0
    %239 = vmatprep.mubr.f32.mxu0 0.0
    %240 = vmatmul.mubr.f32.gmra.mrb[0].mxu0 %v100
    %v241 = vpop.f32.mrb[0].mxu0
    %v242 = vadd.f32 0.0, %v241
    %v243 = vpop.f32.mrb[0].mxu0
    %244 = vmatprep.mubr.f32.mxu0 0.0
    %245 = vmatmul.mubr.f32.gmra.mrb[0].mxu0 %v103
    %v246 = vpop.f32.mrb[0].mxu0
    %v247 = vadd.f32 0.0, %v246
    %v248 = vpop.f32.mrb[0].mxu0
    %249 = vmatprep.mubr.f32.mxu0 0.0
    %250 = vmatmul.mubr.f32.gmra.mrb[0].mxu0 %v106
    %v251 = vpop.f32.mrb[0].mxu0
    %v252 = vadd.f32 0.0, %v251
    %v253 = vpop.f32.mrb[0].mxu0
    %254 = vmatprep.mubr.f32.mxu0 0.0
    %255 = vmatmul.mubr.f32.gmra.mrb[0].mxu0 %v109
    %v256 = vpop.f32.mrb[0].mxu0
    %v257 = vadd.f32 0.0, %v256
    %v258 = vpop.f32.mrb[0].mxu0
    %259 = vmatprep.mubr.f32.mxu0 0.0
    %260 = vmatmul.mubr.f32.gmra.mrb[0].mxu0 %v112
    %v261 = vpop.f32.mrb[0].mxu0
    %v262 = vadd.f32 0.0, %v261
    %v263 = vpop.f32.mrb[0].mxu0
    %264 = vmatprep.mubr.f32.mxu0 0.0
    %265 = vmatmul.mubr.f32.gmra.mrb[0].mxu0 %v115
    %v266 = vpop.f32.mrb[0].mxu0
    %v267 = vadd.f32 0.0, %v266
    %v268 = vpop.f32.mrb[0].mxu0
    %269 = vmatprep.mubr.f32.mxu0 0.0
    %270 = vmatmul.mubr.f32.gmra.mrb[0].mxu0 %v118
    %v271 = vpop.f32.mrb[0].mxu0
    %v272 = vadd.f32 0.0, %v271
    %v273 = vpop.f32.mrb[0].mxu0
    %274 = vmatprep.mubr.f32.mxu0 0.0
    %275 = vmatmul.mubr.f32.gmra.mrb[0].mxu0 %v121
    %v276 = vpop.f32.mrb[0].mxu0
    %v277 = vadd.f32 0.0, %v276
    %v278 = vpop.f32.mrb[0].mxu0
    %279 = vmatprep.mubr.f32.mxu0 0.0
    %280 = vmatmul.mubr.f32.gmra.mrb[0].mxu0 %v124
    %v281 = vpop.f32.mrb[0].mxu0
    %v282 = vadd.f32 0.0, %v281
    %v283 = vpop.f32.mrb[0].mxu0
    %284 = vmatprep.mubr.f32.mxu0 0.0
    %285 = vmatmul.mubr.f32.gmra.mrb[0].mxu0 %v127
    %v286 = vpop.f32.mrb[0].mxu0
    %v287 = vadd.f32 0.0, %v286
    %v288 = vpop.f32.mrb[0].mxu0
    %289 = vmatprep.mubr.f32.mxu0 0.0
    %290 = vmatmul.mubr.f32.gmra.mrb[0].mxu0 %v130
    %v291 = vpop.f32.mrb[0].mxu0
    %v292 = vadd.f32 0.0, %v291
    %v293 = vpop.f32.mrb[0].mxu0
    %294 = vmatprep.mubr.f32.mxu0 0.0
    %295 = vmatmul.mubr.f32.gmra.mrb[0].mxu0 %v133
    %v296 = vpop.f32.mrb[0].mxu0
    %v297 = vadd.f32 0.0, %v296
    %v298 = vpop.f32.mrb[0].mxu0
    %299 = vmatprep.mubr.f32.mxu0 0.0
    %300 = vmatmul.mubr.f32.gmra.mrb[0].mxu0 %v136
    %v301 = vpop.f32.mrb[0].mxu0
    %v302 = vadd.f32 0.0, %v301
    %v303 = vpop.f32.mrb[0].mxu0
    %304 = vmatprep.mubr.f32.mxu0 0.0
    %305 = vmatmul.mubr.f32.gmra.mrb[0].mxu0 %v139
    %v306 = vpop.f32.mrb[0].mxu0
    %v307 = vadd.f32 0.0, %v306
    %v308 = vpop.f32.mrb[0].mxu0
    %309 = vmatprep.mubr.f32.mxu0 0.0
    %310 = vmatmul.mubr.f32.gmra.mrb[0].mxu0 %v142
    %v311 = vpop.f32.mrb[0].mxu0
    %v312 = vadd.f32 0.0, %v311
    %v313 = vpop.f32.mrb[0].mxu0
    %314 = vmatprep.mubr.f32.mxu0 0.0
    %315 = vmatmul.mubr.f32.gmra.mrb[0].mxu0 %v145
    %v316 = vpop.f32.mrb[0].mxu0
    %v317 = vadd.f32 0.0, %v316
    %v318 = vpop.f32.mrb[0].mxu0
    %319 = vmatprep.mubr.f32.mxu0 0.0
    %320 = vmatmul.mubr.f32.gmra.mrb[0].mxu0 %v148
    %v321 = vpop.f32.mrb[0].mxu0
    %v322 = vadd.f32 0.0, %v321
    %v323 = vpop.f32.mrb[0].mxu0
    %324 = vmatprep.mubr.f32.mxu0 0.0
    %325 = vmatmul.mubr.f32.gmra.mrb[0].mxu0 %v151
    %v326 = vpop.f32.mrb[0].mxu0
    %v327 = vadd.f32 0.0, %v326
    %v328 = vpop.f32.mrb[0].mxu0
    %329 = vmatprep.mubr.f32.mxu0 0.0
    %330 = vmatmul.mubr.f32.gmra.mrb[0].mxu0 %v154
    %v331 = vpop.f32.mrb[0].mxu0
    %v332 = vadd.f32 0.0, %v331
    %v333 = vpop.f32.mrb[0].mxu0
    %334 = vmatprep.mubr.f32.mxu0 0.0
    %335 = vmatmul.mubr.f32.gmra.mrb[0].mxu0 %v157
    %v336 = vpop.f32.mrb[0].mxu0
    %v337 = vadd.f32 0.0, %v336
    %v338 = vpop.f32.mrb[0].mxu0
    %339 = vmatprep.mubr.f32.mxu0 0.0
    %340 = vmatmul.mubr.f32.gmra.mrb[0].mxu0 %v160
    %v341 = vpop.f32.mrb[0].mxu0
    %v342 = vadd.f32 0.0, %v341
    %v343 = vpop.f32.mrb[0].mxu0
    %344 = vmatprep.mubr.f32.mxu0 0.0
    %345 = vmatmul.mubr.f32.gmra.mrb[0].mxu0 %v163
    %v346 = vpop.f32.mrb[0].mxu0
    %v347 = vadd.f32 0.0, %v346
    %v348 = vpop.f32.mrb[0].mxu0
    %349 = vmatprep.mubr.f32.mxu0 0.0
    %350 = vmatmul.mubr.f32.gmra.mrb[0].mxu0 %v166
    %v351 = vpop.f32.mrb[0].mxu0
    %v352 = vadd.f32 0.0, %v351
    %v353 = vpop.f32.mrb[0].mxu0
    %354 = vmatprep.mubr.f32.mxu0 0.0
    %355 = vmatmul.mubr.f32.gmra.mrb[0].mxu0 %v169
    %v356 = vpop.f32.mrb[0].mxu0
    %v357 = vadd.f32 0.0, %v356
    %v358 = vpop.f32.mrb[0].mxu0
    %359 = vdwg.mxu0
    %v361 = vsel %vm98, %v61, 0
    %v364 = vsel %vm171, %v92, 0
    %366 = vmatprep.subr.mxu0 0.0
    %367 = vmatpush1.msra.mxu0 %v89
    %368 = vmatprep.subr.mxu0 0.0
    %369 = vmatpush1.msra.mxu0 %v90
    %370 = vmatprep.subr.mxu0 0.0
    %371 = vmatpush1.msra.mxu0 %v91
    %372 = vmatprep.subr.mxu0 0.0
    %373 = vmatpush1.msra.mxu0 %v364
    %374 = vmatprep.subr.mxu0 0.0
    %375 = vmatpush1.msra.mxu0 0.0
    %376 = vmatprep.subr.mxu0 0.0
    %377 = vmatpush1.msra.mxu0 0.0
    %378 = vmatprep.subr.mxu0 0.0
    %379 = vmatpush1.msra.mxu0 0.0
    %380 = vmatprep.subr.mxu0 0.0
    %381 = vmatpush1.msra.mxu0 0.0
    %382 = vmatprep.subr.mxu0 0.0
    %383 = vmatpush1.msra.mxu0 0.0
    %384 = vmatprep.subr.mxu0 0.0
    %385 = vmatpush1.msra.mxu0 0.0
    %386 = vmatprep.subr.mxu0 0.0
    %387 = vmatpush1.msra.mxu0 0.0
    %388 = vmatprep.subr.mxu0 0.0
    %389 = vmatpush1.msra.mxu0 0.0
    %390 = vmatprep.subr.mxu0 0.0
    %391 = vmatpush1.msra.mxu0 0.0
    %392 = vmatprep.subr.mxu0 0.0
    %393 = vmatpush1.msra.mxu0 0.0
    %394 = vmatprep.subr.mxu0 0.0
    %395 = vmatpush1.msra.mxu0 0.0
    %396 = vmatprep.subr.mxu0 0.0
    %397 = vmatpush1.msra.mxu0 0.0
    %398 = vmatprep.subr.mxu0 0.0
    %399 = vmatpush1.msra.mxu0 0.0
    %400 = vmatprep.subr.mxu0 0.0
    %401 = vmatpush1.msra.mxu0 0.0
    %402 = vmatprep.subr.mxu0 0.0
    %403 = vmatpush1.msra.mxu0 0.0
    %404 = vmatprep.subr.mxu0 0.0
    %405 = vmatpush1.msra.mxu0 0.0
    %406 = vmatprep.subr.mxu0 0.0
    %407 = vmatpush1.msra.mxu0 0.0
    %408 = vmatprep.subr.mxu0 0.0
    %409 = vmatpush1.msra.mxu0 0.0
    %410 = vmatprep.subr.mxu0 0.0
    %411 = vmatpush1.msra.mxu0 0.0
    %412 = vmatprep.subr.mxu0 0.0
    %413 = vmatpush1.msra.mxu0 0.0
    %414 = vmatprep.subr.mxu0 0.0
    %415 = vmatpush1.msra.mxu0 0.0
    %416 = vmatprep.subr.mxu0 0.0
    %417 = vmatpush1.msra.mxu0 0.0
    %418 = vmatprep.subr.mxu0 0.0
    %419 = vmatpush1.msra.mxu0 0.0
    %420 = vmatprep.subr.mxu0 0.0
    %421 = vmatpush1.msra.mxu0 0.0
    %422 = vmatprep.subr.mxu0 0.0
    %423 = vmatpush1.msra.mxu0 0.0
    %424 = vmatprep.subr.mxu0 0.0
    %425 = vmatpush1.msra.mxu0 0.0
    %426 = vmatprep.subr.mxu0 0.0
    %427 = vmatpush1.msra.mxu0 0.0
    %428 = vmatprep.subr.mxu0 0.0
    %429 = vmatpush1.msra.mxu0 0.0
    %430 = vmatprep.mubr.f32.mxu0 0.0
    %431 = vmatmul.mubr.f32.gmra.mrb[0].mxu0 %v361
    %v432 = vpop.f32.mrb[0].mxu0
    %v433 = vadd.f32 %v242, %v432
    %v434 = vpop.f32.mrb[0].mxu0
    %435 = vmatprep.mubr.f32.mxu0 0.0
    %436 = vmatmul.mubr.f32.gmra.mrb[0].mxu0 %v100
    %v437 = vpop.f32.mrb[0].mxu0
    %v438 = vadd.f32 %v247, %v437
    %v439 = vpop.f32.mrb[0].mxu0
    %440 = vmatprep.mubr.f32.mxu0 0.0
    %441 = vmatmul.mubr.f32.gmra.mrb[0].mxu0 %v103
    %v442 = vpop.f32.mrb[0].mxu0
    %v443 = vadd.f32 %v252, %v442
    %v444 = vpop.f32.mrb[0].mxu0
    %445 = vmatprep.mubr.f32.mxu0 0.0
    %446 = vmatmul.mubr.f32.gmra.mrb[0].mxu0 %v106
    %v447 = vpop.f32.mrb[0].mxu0
    %v448 = vadd.f32 %v257, %v447
    %v449 = vpop.f32.mrb[0].mxu0
    %450 = vmatprep.mubr.f32.mxu0 0.0
    %451 = vmatmul.mubr.f32.gmra.mrb[0].mxu0 %v109
    %v452 = vpop.f32.mrb[0].mxu0
    %v453 = vadd.f32 %v262, %v452
    %v454 = vpop.f32.mrb[0].mxu0
    %455 = vmatprep.mubr.f32.mxu0 0.0
    %456 = vmatmul.mubr.f32.gmra.mrb[0].mxu0 %v112
    %v457 = vpop.f32.mrb[0].mxu0
    %v458 = vadd.f32 %v267, %v457
    %v459 = vpop.f32.mrb[0].mxu0
    %460 = vmatprep.mubr.f32.mxu0 0.0
    %461 = vmatmul.mubr.f32.gmra.mrb[0].mxu0 %v115
    %v462 = vpop.f32.mrb[0].mxu0
    %v463 = vadd.f32 %v272, %v462
    %v464 = vpop.f32.mrb[0].mxu0
    %465 = vmatprep.mubr.f32.mxu0 0.0
    %466 = vmatmul.mubr.f32.gmra.mrb[0].mxu0 %v118
    %v467 = vpop.f32.mrb[0].mxu0
    %v468 = vadd.f32 %v277, %v467
    %v469 = vpop.f32.mrb[0].mxu0
    %470 = vmatprep.mubr.f32.mxu0 0.0
    %471 = vmatmul.mubr.f32.gmra.mrb[0].mxu0 %v121
    %v472 = vpop.f32.mrb[0].mxu0
    %v473 = vadd.f32 %v282, %v472
    %v474 = vpop.f32.mrb[0].mxu0
    %475 = vmatprep.mubr.f32.mxu0 0.0
    %476 = vmatmul.mubr.f32.gmra.mrb[0].mxu0 %v124
    %v477 = vpop.f32.mrb[0].mxu0
    %v478 = vadd.f32 %v287, %v477
    %v479 = vpop.f32.mrb[0].mxu0
    %480 = vmatprep.mubr.f32.mxu0 0.0
    %481 = vmatmul.mubr.f32.gmra.mrb[0].mxu0 %v127
    %v482 = vpop.f32.mrb[0].mxu0
    %v483 = vadd.f32 %v292, %v482
    %v484 = vpop.f32.mrb[0].mxu0
    %485 = vmatprep.mubr.f32.mxu0 0.0
    %486 = vmatmul.mubr.f32.gmra.mrb[0].mxu0 %v130
    %v487 = vpop.f32.mrb[0].mxu0
    %v488 = vadd.f32 %v297, %v487
    %v489 = vpop.f32.mrb[0].mxu0
    %490 = vmatprep.mubr.f32.mxu0 0.0
    %491 = vmatmul.mubr.f32.gmra.mrb[0].mxu0 %v133
    %v492 = vpop.f32.mrb[0].mxu0
    %v493 = vadd.f32 %v302, %v492
    %v494 = vpop.f32.mrb[0].mxu0
    %495 = vmatprep.mubr.f32.mxu0 0.0
    %496 = vmatmul.mubr.f32.gmra.mrb[0].mxu0 %v136
    %v497 = vpop.f32.mrb[0].mxu0
    %v498 = vadd.f32 %v307, %v497
    %v499 = vpop.f32.mrb[0].mxu0
    %500 = vmatprep.mubr.f32.mxu0 0.0
    %501 = vmatmul.mubr.f32.gmra.mrb[0].mxu0 %v139
    %v502 = vpop.f32.mrb[0].mxu0
    %v503 = vadd.f32 %v312, %v502
    %v504 = vpop.f32.mrb[0].mxu0
    %505 = vmatprep.mubr.f32.mxu0 0.0
    %506 = vmatmul.mubr.f32.gmra.mrb[0].mxu0 %v142
    %v507 = vpop.f32.mrb[0].mxu0
    %v508 = vadd.f32 %v317, %v507
    %v509 = vpop.f32.mrb[0].mxu0
    %510 = vmatprep.mubr.f32.mxu0 0.0
    %511 = vmatmul.mubr.f32.gmra.mrb[0].mxu0 %v145
    %v512 = vpop.f32.mrb[0].mxu0
    %v513 = vadd.f32 %v322, %v512
    %v514 = vpop.f32.mrb[0].mxu0
    %515 = vmatprep.mubr.f32.mxu0 0.0
    %516 = vmatmul.mubr.f32.gmra.mrb[0].mxu0 %v148
    %v517 = vpop.f32.mrb[0].mxu0
    %v518 = vadd.f32 %v327, %v517
    %v519 = vpop.f32.mrb[0].mxu0
    %520 = vmatprep.mubr.f32.mxu0 0.0
    %521 = vmatmul.mubr.f32.gmra.mrb[0].mxu0 %v151
    %v522 = vpop.f32.mrb[0].mxu0
    %v523 = vadd.f32 %v332, %v522
    %v524 = vpop.f32.mrb[0].mxu0
    %525 = vmatprep.mubr.f32.mxu0 0.0
    %526 = vmatmul.mubr.f32.gmra.mrb[0].mxu0 %v154
    %v527 = vpop.f32.mrb[0].mxu0
    %v528 = vadd.f32 %v337, %v527
    %v529 = vpop.f32.mrb[0].mxu0
    %530 = vmatprep.mubr.f32.mxu0 0.0
    %531 = vmatmul.mubr.f32.gmra.mrb[0].mxu0 %v157
    %v532 = vpop.f32.mrb[0].mxu0
    %v533 = vadd.f32 %v342, %v532
    %v534 = vpop.f32.mrb[0].mxu0
    %535 = vmatprep.mubr.f32.mxu0 0.0
    %536 = vmatmul.mubr.f32.gmra.mrb[0].mxu0 %v160
    %v537 = vpop.f32.mrb[0].mxu0
    %v538 = vadd.f32 %v347, %v537
    %v539 = vpop.f32.mrb[0].mxu0
    %540 = vmatprep.mubr.f32.mxu0 0.0
    %541 = vmatmul.mubr.f32.gmra.mrb[0].mxu0 %v163
    %v542 = vpop.f32.mrb[0].mxu0
    %v543 = vadd.f32 %v352, %v542
    %v544 = vpop.f32.mrb[0].mxu0
    %545 = vmatprep.mubr.f32.mxu0 0.0
    %546 = vmatmul.mubr.f32.gmra.mrb[0].mxu0 %v166
    %v547 = vpop.f32.mrb[0].mxu0
    %v548 = vadd.f32 %v357, %v547
    %v549 = vpop.f32.mrb[0].mxu0
    %550 = vdwg.mxu0
    %s551 = scalar_lea.vmem [#allocation5], 64
    %v552 = vld [vmem:[%s551] sm:$0xff]
    %v553 = vld [vmem:[%s551 + $0x8] sm:$0xff]
    %v554 = vld [vmem:[%s551 + $0x10] sm:$0xff]
    %v555 = vld [vmem:[%s551 + $0x18] sm:$0xf]
    %v557 = vsel %vm98, %v86, 0
    %v560 = vsel %vm171, %v555, 0
    %562 = vmatprep.subr.mxu0 0.0
    %563 = vmatpush1.msra.mxu0 %v552
    %564 = vmatprep.subr.mxu0 0.0
    %565 = vmatpush1.msra.mxu0 %v553
    %566 = vmatprep.subr.mxu0 0.0
    %567 = vmatpush1.msra.mxu0 %v554
    %568 = vmatprep.subr.mxu0 0.0
    %569 = vmatpush1.msra.mxu0 %v560
    %570 = vmatprep.subr.mxu0 0.0
    %571 = vmatpush1.msra.mxu0 0.0
    %572 = vmatprep.subr.mxu0 0.0
    %573 = vmatpush1.msra.mxu0 0.0
    %574 = vmatprep.subr.mxu0 0.0
    %575 = vmatpush1.msra.mxu0 0.0
    %576 = vmatprep.subr.mxu0 0.0
    %577 = vmatpush1.msra.mxu0 0.0
    %578 = vmatprep.subr.mxu0 0.0
    %579 = vmatpush1.msra.mxu0 0.0
    %580 = vmatprep.subr.mxu0 0.0
    %581 = vmatpush1.msra.mxu0 0.0
    %582 = vmatprep.subr.mxu0 0.0
    %583 = vmatpush1.msra.mxu0 0.0
    %584 = vmatprep.subr.mxu0 0.0
    %585 = vmatpush1.msra.mxu0 0.0
    %586 = vmatprep.subr.mxu0 0.0
    %587 = vmatpush1.msra.mxu0 0.0
    %588 = vmatprep.subr.mxu0 0.0
    %589 = vmatpush1.msra.mxu0 0.0
    %590 = vmatprep.subr.mxu0 0.0
    %591 = vmatpush1.msra.mxu0 0.0
    %592 = vmatprep.subr.mxu0 0.0
    %593 = vmatpush1.msra.mxu0 0.0
    %594 = vmatprep.subr.mxu0 0.0
    %595 = vmatpush1.msra.mxu0 0.0
    %596 = vmatprep.subr.mxu0 0.0
    %597 = vmatpush1.msra.mxu0 0.0
    %598 = vmatprep.subr.mxu0 0.0
    %599 = vmatpush1.msra.mxu0 0.0
    %600 = vmatprep.subr.mxu0 0.0
    %601 = vmatpush1.msra.mxu0 0.0
    %602 = vmatprep.subr.mxu0 0.0
    %603 = vmatpush1.msra.mxu0 0.0
    %604 = vmatprep.subr.mxu0 0.0
    %605 = vmatpush1.msra.mxu0 0.0
    %606 = vmatprep.subr.mxu0 0.0
    %607 = vmatpush1.msra.mxu0 0.0
    %608 = vmatprep.subr.mxu0 0.0
    %609 = vmatpush1.msra.mxu0 0.0
    %610 = vmatprep.subr.mxu0 0.0
    %611 = vmatpush1.msra.mxu0 0.0
    %612 = vmatprep.subr.mxu0 0.0
    %613 = vmatpush1.msra.mxu0 0.0
    %614 = vmatprep.subr.mxu0 0.0
    %615 = vmatpush1.msra.mxu0 0.0
    %616 = vmatprep.subr.mxu0 0.0
    %617 = vmatpush1.msra.mxu0 0.0
    %618 = vmatprep.subr.mxu0 0.0
    %619 = vmatpush1.msra.mxu0 0.0
    %620 = vmatprep.subr.mxu0 0.0
    %621 = vmatpush1.msra.mxu0 0.0
    %622 = vmatprep.subr.mxu0 0.0
    %623 = vmatpush1.msra.mxu0 0.0
    %624 = vmatprep.subr.mxu0 0.0
    %625 = vmatpush1.msra.mxu0 0.0
    %626 = vmatprep.mubr.f32.mxu0 0.0
    %627 = vmatmul.mubr.f32.gmra.mrb[0].mxu0 %v103
    %v628 = vpop.f32.mrb[0].mxu0
    %v629 = vadd.f32 0.0, %v628
    %v630 = vpop.f32.mrb[0].mxu0
    %631 = vmatprep.mubr.f32.mxu0 0.0
    %632 = vmatmul.mubr.f32.gmra.mrb[0].mxu0 %v106
    %v633 = vpop.f32.mrb[0].mxu0
    %v634 = vadd.f32 0.0, %v633
    %v635 = vpop.f32.mrb[0].mxu0
    %636 = vmatprep.mubr.f32.mxu0 0.0
    %637 = vmatmul.mubr.f32.gmra.mrb[0].mxu0 %v109
    %v638 = vpop.f32.mrb[0].mxu0
    %v639 = vadd.f32 0.0, %v638
    %v640 = vpop.f32.mrb[0].mxu0
    %641 = vmatprep.mubr.f32.mxu0 0.0
    %642 = vmatmul.mubr.f32.gmra.mrb[0].mxu0 %v112
    %v643 = vpop.f32.mrb[0].mxu0
    %v644 = vadd.f32 0.0, %v643
    %v645 = vpop.f32.mrb[0].mxu0
    %646 = vmatprep.mubr.f32.mxu0 0.0
    %647 = vmatmul.mubr.f32.gmra.mrb[0].mxu0 %v115
    %v648 = vpop.f32.mrb[0].mxu0
    %v649 = vadd.f32 0.0, %v648
    %v650 = vpop.f32.mrb[0].mxu0
    %651 = vmatprep.mubr.f32.mxu0 0.0
    %652 = vmatmul.mubr.f32.gmra.mrb[0].mxu0 %v118
    %v653 = vpop.f32.mrb[0].mxu0
    %v654 = vadd.f32 0.0, %v653
    %v655 = vpop.f32.mrb[0].mxu0
    %656 = vmatprep.mubr.f32.mxu0 0.0
    %657 = vmatmul.mubr.f32.gmra.mrb[0].mxu0 %v121
    %v658 = vpop.f32.mrb[0].mxu0
    %v659 = vadd.f32 0.0, %v658
    %v660 = vpop.f32.mrb[0].mxu0
    %661 = vmatprep.mubr.f32.mxu0 0.0
    %662 = vmatmul.mubr.f32.gmra.mrb[0].mxu0 %v124
    %v663 = vpop.f32.mrb[0].mxu0
    %v664 = vadd.f32 0.0, %v663
    %v665 = vpop.f32.mrb[0].mxu0
    %666 = vmatprep.mubr.f32.mxu0 0.0
    %667 = vmatmul.mubr.f32.gmra.mrb[0].mxu0 %v127
    %v668 = vpop.f32.mrb[0].mxu0
    %v669 = vadd.f32 0.0, %v668
    %v670 = vpop.f32.mrb[0].mxu0
    %671 = vmatprep.mubr.f32.mxu0 0.0
    %672 = vmatmul.mubr.f32.gmra.mrb[0].mxu0 %v130
    %v673 = vpop.f32.mrb[0].mxu0
    %v674 = vadd.f32 0.0, %v673
    %v675 = vpop.f32.mrb[0].mxu0
    %676 = vmatprep.mubr.f32.mxu0 0.0
    %677 = vmatmul.mubr.f32.gmra.mrb[0].mxu0 %v133
    %v678 = vpop.f32.mrb[0].mxu0
    %v679 = vadd.f32 0.0, %v678
    %v680 = vpop.f32.mrb[0].mxu0
    %681 = vmatprep.mubr.f32.mxu0 0.0
    %682 = vmatmul.mubr.f32.gmra.mrb[0].mxu0 %v136
    %v683 = vpop.f32.mrb[0].mxu0
    %v684 = vadd.f32 0.0, %v683
    %v685 = vpop.f32.mrb[0].mxu0
    %686 = vmatprep.mubr.f32.mxu0 0.0
    %687 = vmatmul.mubr.f32.gmra.mrb[0].mxu0 %v139
    %v688 = vpop.f32.mrb[0].mxu0
    %v689 = vadd.f32 0.0, %v688
    %v690 = vpop.f32.mrb[0].mxu0
    %691 = vmatprep.mubr.f32.mxu0 0.0
    %692 = vmatmul.mubr.f32.gmra.mrb[0].mxu0 %v142
    %v693 = vpop.f32.mrb[0].mxu0
    %v694 = vadd.f32 0.0, %v693
    %v695 = vpop.f32.mrb[0].mxu0
    %696 = vmatprep.mubr.f32.mxu0 0.0
    %697 = vmatmul.mubr.f32.gmra.mrb[0].mxu0 %v145
    %v698 = vpop.f32.mrb[0].mxu0
    %v699 = vadd.f32 0.0, %v698
    %v700 = vpop.f32.mrb[0].mxu0
    %701 = vmatprep.mubr.f32.mxu0 0.0
    %702 = vmatmul.mubr.f32.gmra.mrb[0].mxu0 %v148
    %v703 = vpop.f32.mrb[0].mxu0
    %v704 = vadd.f32 0.0, %v703
    %v705 = vpop.f32.mrb[0].mxu0
    %706 = vmatprep.mubr.f32.mxu0 0.0
    %707 = vmatmul.mubr.f32.gmra.mrb[0].mxu0 %v151
    %v708 = vpop.f32.mrb[0].mxu0
    %v709 = vadd.f32 0.0, %v708
    %v710 = vpop.f32.mrb[0].mxu0
    %711 = vmatprep.mubr.f32.mxu0 0.0
    %712 = vmatmul.mubr.f32.gmra.mrb[0].mxu0 %v154
    %v713 = vpop.f32.mrb[0].mxu0
    %v714 = vadd.f32 0.0, %v713
    %v715 = vpop.f32.mrb[0].mxu0
    %716 = vmatprep.mubr.f32.mxu0 0.0
    %717 = vmatmul.mubr.f32.gmra.mrb[0].mxu0 %v157
    %v718 = vpop.f32.mrb[0].mxu0
    %v719 = vadd.f32 0.0, %v718
    %v720 = vpop.f32.mrb[0].mxu0
    %721 = vmatprep.mubr.f32.mxu0 0.0
    %722 = vmatmul.mubr.f32.gmra.mrb[0].mxu0 %v160
    %v723 = vpop.f32.mrb[0].mxu0
    %v724 = vadd.f32 0.0, %v723
    %v725 = vpop.f32.mrb[0].mxu0
    %726 = vmatprep.mubr.f32.mxu0 0.0
    %727 = vmatmul.mubr.f32.gmra.mrb[0].mxu0 %v163
    %v728 = vpop.f32.mrb[0].mxu0
    %v729 = vadd.f32 0.0, %v728
    %v730 = vpop.f32.mrb[0].mxu0
    %731 = vmatprep.mubr.f32.mxu0 0.0
    %732 = vmatmul.mubr.f32.gmra.mrb[0].mxu0 %v166
    %v733 = vpop.f32.mrb[0].mxu0
    %v734 = vadd.f32 0.0, %v733
    %v735 = vpop.f32.mrb[0].mxu0
    %736 = vmatprep.mubr.f32.mxu0 0.0
    %737 = vmatmul.mubr.f32.gmra.mrb[0].mxu0 %v169
    %v738 = vpop.f32.mrb[0].mxu0
    %v739 = vadd.f32 0.0, %v738
    %v740 = vpop.f32.mrb[0].mxu0
    %741 = vmatprep.mubr.f32.mxu0 0.0
    %742 = vmatmul.mubr.f32.gmra.mrb[0].mxu0 %v557
    %v743 = vpop.f32.mrb[0].mxu0
    %v744 = vadd.f32 0.0, %v743
    %v745 = vpop.f32.mrb[0].mxu0
    %746 = vdwg.mxu0
    %v747 = vadd.f32 %v433, %v629
    %v748 = vadd.f32 %v438, %v634
    %v749 = vadd.f32 %v443, %v639
    %v750 = vadd.f32 %v448, %v644
    %v751 = vadd.f32 %v453, %v649
    %v752 = vadd.f32 %v458, %v654
    %v753 = vadd.f32 %v463, %v659
    %v754 = vadd.f32 %v468, %v664
    %v755 = vadd.f32 %v473, %v669
    %v756 = vadd.f32 %v478, %v674
    %v757 = vadd.f32 %v483, %v679
    %v758 = vadd.f32 %v488, %v684
    %v759 = vadd.f32 %v493, %v689
    %v760 = vadd.f32 %v498, %v694
    %v761 = vadd.f32 %v503, %v699
    %v762 = vadd.f32 %v508, %v704
    %v763 = vadd.f32 %v513, %v709
    %v764 = vadd.f32 %v518, %v714
    %v765 = vadd.f32 %v523, %v719
    %v766 = vadd.f32 %v528, %v724
    %v767 = vadd.f32 %v533, %v729
    %v768 = vadd.f32 %v538, %v734
    %v769 = vadd.f32 %v543, %v739
    %v770 = vadd.f32 %v548, %v744
    %s771 = scalar_lea.vmem [#allocation5], 96
    %v772 = vld [vmem:[%s771] sm:$0xff]
    %v773 = vld [vmem:[%s771 + $0x8] sm:$0xff]
    %v774 = vld [vmem:[%s771 + $0x10] sm:$0xff]
    %v775 = vld [vmem:[%s771 + $0x18] sm:$0xf]
    %v777 = vsel %vm98, %v87, 0
    %v780 = vsel %vm171, %v775, 0
    %782 = vmatprep.subr.mxu0 0.0
    %783 = vmatpush1.msra.mxu0 %v772
    %784 = vmatprep.subr.mxu0 0.0
    %785 = vmatpush1.msra.mxu0 %v773
    %786 = vmatprep.subr.mxu0 0.0
    %787 = vmatpush1.msra.mxu0 %v774
    %788 = vmatprep.subr.mxu0 0.0
    %789 = vmatpush1.msra.mxu0 %v780
    %790 = vmatprep.subr.mxu0 0.0
    %791 = vmatpush1.msra.mxu0 0.0
    %792 = vmatprep.subr.mxu0 0.0
    %793 = vmatpush1.msra.mxu0 0.0
    %794 = vmatprep.subr.mxu0 0.0
    %795 = vmatpush1.msra.mxu0 0.0
    %796 = vmatprep.subr.mxu0 0.0
    %797 = vmatpush1.msra.mxu0 0.0
    %798 = vmatprep.subr.mxu0 0.0
    %799 = vmatpush1.msra.mxu0 0.0
    %800 = vmatprep.subr.mxu0 0.0
    %801 = vmatpush1.msra.mxu0 0.0
    %802 = vmatprep.subr.mxu0 0.0
    %803 = vmatpush1.msra.mxu0 0.0
    %804 = vmatprep.subr.mxu0 0.0
    %805 = vmatpush1.msra.mxu0 0.0
    %806 = vmatprep.subr.mxu0 0.0
    %807 = vmatpush1.msra.mxu0 0.0
    %808 = vmatprep.subr.mxu0 0.0
    %809 = vmatpush1.msra.mxu0 0.0
    %810 = vmatprep.subr.mxu0 0.0
    %811 = vmatpush1.msra.mxu0 0.0
    %812 = vmatprep.subr.mxu0 0.0
    %813 = vmatpush1.msra.mxu0 0.0
    %814 = vmatprep.subr.mxu0 0.0
    %815 = vmatpush1.msra.mxu0 0.0
    %816 = vmatprep.subr.mxu0 0.0
    %817 = vmatpush1.msra.mxu0 0.0
    %818 = vmatprep.subr.mxu0 0.0
    %819 = vmatpush1.msra.mxu0 0.0
    %820 = vmatprep.subr.mxu0 0.0
    %821 = vmatpush1.msra.mxu0 0.0
    %822 = vmatprep.subr.mxu0 0.0
    %823 = vmatpush1.msra.mxu0 0.0
    %824 = vmatprep.subr.mxu0 0.0
    %825 = vmatpush1.msra.mxu0 0.0
    %826 = vmatprep.subr.mxu0 0.0
    %827 = vmatpush1.msra.mxu0 0.0
    %828 = vmatprep.subr.mxu0 0.0
    %829 = vmatpush1.msra.mxu0 0.0
    %830 = vmatprep.subr.mxu0 0.0
    %831 = vmatpush1.msra.mxu0 0.0
    %832 = vmatprep.subr.mxu0 0.0
    %833 = vmatpush1.msra.mxu0 0.0
    %834 = vmatprep.subr.mxu0 0.0
    %835 = vmatpush1.msra.mxu0 0.0
    %836 = vmatprep.subr.mxu0 0.0
    %837 = vmatpush1.msra.mxu0 0.0
    %838 = vmatprep.subr.mxu0 0.0
    %839 = vmatpush1.msra.mxu0 0.0
    %840 = vmatprep.subr.mxu0 0.0
    %841 = vmatpush1.msra.mxu0 0.0
    %842 = vmatprep.subr.mxu0 0.0
    %843 = vmatpush1.msra.mxu0 0.0
    %844 = vmatprep.subr.mxu0 0.0
    %845 = vmatpush1.msra.mxu0 0.0
    %846 = vmatprep.mubr.f32.mxu0 0.0
    %847 = vmatmul.mubr.f32.gmra.mrb[0].mxu0 %v106
    %v848 = vpop.f32.mrb[0].mxu0
    %v849 = vadd.f32 0.0, %v848
    %v850 = vpop.f32.mrb[0].mxu0
    %851 = vmatprep.mubr.f32.mxu0 0.0
    %852 = vmatmul.mubr.f32.gmra.mrb[0].mxu0 %v109
    %v853 = vpop.f32.mrb[0].mxu0
    %v854 = vadd.f32 0.0, %v853
    %v855 = vpop.f32.mrb[0].mxu0
    %856 = vmatprep.mubr.f32.mxu0 0.0
    %857 = vmatmul.mubr.f32.gmra.mrb[0].mxu0 %v112
    %v858 = vpop.f32.mrb[0].mxu0
    %v859 = vadd.f32 0.0, %v858
    %v860 = vpop.f32.mrb[0].mxu0
    %861 = vmatprep.mubr.f32.mxu0 0.0
    %862 = vmatmul.mubr.f32.gmra.mrb[0].mxu0 %v115
    %v863 = vpop.f32.mrb[0].mxu0
    %v864 = vadd.f32 0.0, %v863
    %v865 = vpop.f32.mrb[0].mxu0
    %866 = vmatprep.mubr.f32.mxu0 0.0
    %867 = vmatmul.mubr.f32.gmra.mrb[0].mxu0 %v118
    %v868 = vpop.f32.mrb[0].mxu0
    %v869 = vadd.f32 0.0, %v868
    %v870 = vpop.f32.mrb[0].mxu0
    %871 = vmatprep.mubr.f32.mxu0 0.0
    %872 = vmatmul.mubr.f32.gmra.mrb[0].mxu0 %v121
    %v873 = vpop.f32.mrb[0].mxu0
    %v874 = vadd.f32 0.0, %v873
    %v875 = vpop.f32.mrb[0].mxu0
    %876 = vmatprep.mubr.f32.mxu0 0.0
    %877 = vmatmul.mubr.f32.gmra.mrb[0].mxu0 %v124
    %v878 = vpop.f32.mrb[0].mxu0
    %v879 = vadd.f32 0.0, %v878
    %v880 = vpop.f32.mrb[0].mxu0
    %881 = vmatprep.mubr.f32.mxu0 0.0
    %882 = vmatmul.mubr.f32.gmra.mrb[0].mxu0 %v127
    %v883 = vpop.f32.mrb[0].mxu0
    %v884 = vadd.f32 0.0, %v883
    %v885 = vpop.f32.mrb[0].mxu0
    %886 = vmatprep.mubr.f32.mxu0 0.0
    %887 = vmatmul.mubr.f32.gmra.mrb[0].mxu0 %v130
    %v888 = vpop.f32.mrb[0].mxu0
    %v889 = vadd.f32 0.0, %v888
    %v890 = vpop.f32.mrb[0].mxu0
    %891 = vmatprep.mubr.f32.mxu0 0.0
    %892 = vmatmul.mubr.f32.gmra.mrb[0].mxu0 %v133
    %v893 = vpop.f32.mrb[0].mxu0
    %v894 = vadd.f32 0.0, %v893
    %v895 = vpop.f32.mrb[0].mxu0
    %896 = vmatprep.mubr.f32.mxu0 0.0
    %897 = vmatmul.mubr.f32.gmra.mrb[0].mxu0 %v136
    %v898 = vpop.f32.mrb[0].mxu0
    %v899 = vadd.f32 0.0, %v898
    %v900 = vpop.f32.mrb[0].mxu0
    %901 = vmatprep.mubr.f32.mxu0 0.0
    %902 = vmatmul.mubr.f32.gmra.mrb[0].mxu0 %v139
    %v903 = vpop.f32.mrb[0].mxu0
    %v904 = vadd.f32 0.0, %v903
    %v905 = vpop.f32.mrb[0].mxu0
    %906 = vmatprep.mubr.f32.mxu0 0.0
    %907 = vmatmul.mubr.f32.gmra.mrb[0].mxu0 %v142
    %v908 = vpop.f32.mrb[0].mxu0
    %v909 = vadd.f32 0.0, %v908
    %v910 = vpop.f32.mrb[0].mxu0
    %911 = vmatprep.mubr.f32.mxu0 0.0
    %912 = vmatmul.mubr.f32.gmra.mrb[0].mxu0 %v145
    %v913 = vpop.f32.mrb[0].mxu0
    %v914 = vadd.f32 0.0, %v913
    %v915 = vpop.f32.mrb[0].mxu0
    %916 = vmatprep.mubr.f32.mxu0 0.0
    %917 = vmatmul.mubr.f32.gmra.mrb[0].mxu0 %v148
    %v918 = vpop.f32.mrb[0].mxu0
    %v919 = vadd.f32 0.0, %v918
    %v920 = vpop.f32.mrb[0].mxu0
    %921 = vmatprep.mubr.f32.mxu0 0.0
    %922 = vmatmul.mubr.f32.gmra.mrb[0].mxu0 %v151
    %v923 = vpop.f32.mrb[0].mxu0
    %v924 = vadd.f32 0.0, %v923
    %v925 = vpop.f32.mrb[0].mxu0
    %926 = vmatprep.mubr.f32.mxu0 0.0
    %927 = vmatmul.mubr.f32.gmra.mrb[0].mxu0 %v154
    %v928 = vpop.f32.mrb[0].mxu0
    %v929 = vadd.f32 0.0, %v928
    %v930 = vpop.f32.mrb[0].mxu0
    %931 = vmatprep.mubr.f32.mxu0 0.0
    %932 = vmatmul.mubr.f32.gmra.mrb[0].mxu0 %v157
    %v933 = vpop.f32.mrb[0].mxu0
    %v934 = vadd.f32 0.0, %v933
    %v935 = vpop.f32.mrb[0].mxu0
    %936 = vmatprep.mubr.f32.mxu0 0.0
    %937 = vmatmul.mubr.f32.gmra.mrb[0].mxu0 %v160
    %v938 = vpop.f32.mrb[0].mxu0
    %v939 = vadd.f32 0.0, %v938
    %v940 = vpop.f32.mrb[0].mxu0
    %941 = vmatprep.mubr.f32.mxu0 0.0
    %942 = vmatmul.mubr.f32.gmra.mrb[0].mxu0 %v163
    %v943 = vpop.f32.mrb[0].mxu0
    %v944 = vadd.f32 0.0, %v943
    %v945 = vpop.f32.mrb[0].mxu0
    %946 = vmatprep.mubr.f32.mxu0 0.0
    %947 = vmatmul.mubr.f32.gmra.mrb[0].mxu0 %v166
    %v948 = vpop.f32.mrb[0].mxu0
    %v949 = vadd.f32 0.0, %v948
    %v950 = vpop.f32.mrb[0].mxu0
    %951 = vmatprep.mubr.f32.mxu0 0.0
    %952 = vmatmul.mubr.f32.gmra.mrb[0].mxu0 %v169
    %v953 = vpop.f32.mrb[0].mxu0
    %v954 = vadd.f32 0.0, %v953
    %v955 = vpop.f32.mrb[0].mxu0
    %956 = vmatprep.mubr.f32.mxu0 0.0
    %957 = vmatmul.mubr.f32.gmra.mrb[0].mxu0 %v557
    %v958 = vpop.f32.mrb[0].mxu0
    %v959 = vadd.f32 0.0, %v958
    %v960 = vpop.f32.mrb[0].mxu0
    %961 = vmatprep.mubr.f32.mxu0 0.0
    %962 = vmatmul.mubr.f32.gmra.mrb[0].mxu0 %v777
    %v963 = vpop.f32.mrb[0].mxu0
    %v964 = vadd.f32 0.0, %v963
    %v965 = vpop.f32.mrb[0].mxu0
    %966 = vdwg.mxu0
    %v967 = vadd.f32 %v747, %v849
    %v968 = vadd.f32 %v748, %v854
    %v969 = vadd.f32 %v749, %v859
    %v970 = vadd.f32 %v750, %v864
    %v971 = vadd.f32 %v751, %v869
    %v972 = vadd.f32 %v752, %v874
    %v973 = vadd.f32 %v753, %v879
    %v974 = vadd.f32 %v754, %v884
    %v975 = vadd.f32 %v755, %v889
    %v976 = vadd.f32 %v756, %v894
    %v977 = vadd.f32 %v757, %v899
    %v978 = vadd.f32 %v758, %v904
    %v979 = vadd.f32 %v759, %v909
    %v980 = vadd.f32 %v760, %v914
    %v981 = vadd.f32 %v761, %v919
    %v982 = vadd.f32 %v762, %v924
    %v983 = vadd.f32 %v763, %v929
    %v984 = vadd.f32 %v764, %v934
    %v985 = vadd.f32 %v765, %v939
    %v986 = vadd.f32 %v766, %v944
    %v987 = vadd.f32 %v767, %v949
    %v988 = vadd.f32 %v768, %v954
    %v989 = vadd.f32 %v769, %v959
    %v990 = vadd.f32 %v770, %v964
    %s991 = scalar_lea.vmem [#allocation5], 128
    %v992 = vld [vmem:[%s991] sm:$0xff]
    %v993 = vld [vmem:[%s991 + $0x8] sm:$0xff]
    %v994 = vld [vmem:[%s991 + $0x10] sm:$0xff]
    %v995 = vld [vmem:[%s991 + $0x18] sm:$0xf]
    %v997 = vsel %vm98, %v88, 0
    %v1000 = vsel %vm171, %v995, 0
    %1002 = vmatprep.subr.mxu0 0.0
    %1003 = vmatpush1.msra.mxu0 %v992
    %1004 = vmatprep.subr.mxu0 0.0
    %1005 = vmatpush1.msra.mxu0 %v993
    %1006 = vmatprep.subr.mxu0 0.0
    %1007 = vmatpush1.msra.mxu0 %v994
    %1008 = vmatprep.subr.mxu0 0.0
    %1009 = vmatpush1.msra.mxu0 %v1000
    %1010 = vmatprep.subr.mxu0 0.0
    %1011 = vmatpush1.msra.mxu0 0.0
    %1012 = vmatprep.subr.mxu0 0.0
    %1013 = vmatpush1.msra.mxu0 0.0
    %1014 = vmatprep.subr.mxu0 0.0
    %1015 = vmatpush1.msra.mxu0 0.0
    %1016 = vmatprep.subr.mxu0 0.0
    %1017 = vmatpush1.msra.mxu0 0.0
    %1018 = vmatprep.subr.mxu0 0.0
    %1019 = vmatpush1.msra.mxu0 0.0
    %1020 = vmatprep.subr.mxu0 0.0
    %1021 = vmatpush1.msra.mxu0 0.0
    %1022 = vmatprep.subr.mxu0 0.0
    %1023 = vmatpush1.msra.mxu0 0.0
    %1024 = vmatprep.subr.mxu0 0.0
    %1025 = vmatpush1.msra.mxu0 0.0
    %1026 = vmatprep.subr.mxu0 0.0
    %1027 = vmatpush1.msra.mxu0 0.0
    %1028 = vmatprep.subr.mxu0 0.0
    %1029 = vmatpush1.msra.mxu0 0.0
    %1030 = vmatprep.subr.mxu0 0.0
    %1031 = vmatpush1.msra.mxu0 0.0
    %1032 = vmatprep.subr.mxu0 0.0
    %1033 = vmatpush1.msra.mxu0 0.0
    %1034 = vmatprep.subr.mxu0 0.0
    %1035 = vmatpush1.msra.mxu0 0.0
    %1036 = vmatprep.subr.mxu0 0.0
    %1037 = vmatpush1.msra.mxu0 0.0
    %1038 = vmatprep.subr.mxu0 0.0
    %1039 = vmatpush1.msra.mxu0 0.0
    %1040 = vmatprep.subr.mxu0 0.0
    %1041 = vmatpush1.msra.mxu0 0.0
    %1042 = vmatprep.subr.mxu0 0.0
    %1043 = vmatpush1.msra.mxu0 0.0
    %1044 = vmatprep.subr.mxu0 0.0
    %1045 = vmatpush1.msra.mxu0 0.0
    %1046 = vmatprep.subr.mxu0 0.0
    %1047 = vmatpush1.msra.mxu0 0.0
    %1048 = vmatprep.subr.mxu0 0.0
    %1049 = vmatpush1.msra.mxu0 0.0
    %1050 = vmatprep.subr.mxu0 0.0
    %1051 = vmatpush1.msra.mxu0 0.0
    %1052 = vmatprep.subr.mxu0 0.0
    %1053 = vmatpush1.msra.mxu0 0.0
    %1054 = vmatprep.subr.mxu0 0.0
    %1055 = vmatpush1.msra.mxu0 0.0
    %1056 = vmatprep.subr.mxu0 0.0
    %1057 = vmatpush1.msra.mxu0 0.0
    %1058 = vmatprep.subr.mxu0 0.0
    %1059 = vmatpush1.msra.mxu0 0.0
    %1060 = vmatprep.subr.mxu0 0.0
    %1061 = vmatpush1.msra.mxu0 0.0
    %1062 = vmatprep.subr.mxu0 0.0
    %1063 = vmatpush1.msra.mxu0 0.0
    %1064 = vmatprep.subr.mxu0 0.0
    %1065 = vmatpush1.msra.mxu0 0.0
    %1066 = vmatprep.mubr.f32.mxu0 0.0
    %1067 = vmatmul.mubr.f32.gmra.mrb[0].mxu0 %v109
    %v1068 = vpop.f32.mrb[0].mxu0
    %v1069 = vadd.f32 0.0, %v1068
    %v1070 = vpop.f32.mrb[0].mxu0
    %1071 = vmatprep.mubr.f32.mxu0 0.0
    %1072 = vmatmul.mubr.f32.gmra.mrb[0].mxu0 %v112
    %v1073 = vpop.f32.mrb[0].mxu0
    %v1074 = vadd.f32 0.0, %v1073
    %v1075 = vpop.f32.mrb[0].mxu0
    %1076 = vmatprep.mubr.f32.mxu0 0.0
    %1077 = vmatmul.mubr.f32.gmra.mrb[0].mxu0 %v115
    %v1078 = vpop.f32.mrb[0].mxu0
    %v1079 = vadd.f32 0.0, %v1078
    %v1080 = vpop.f32.mrb[0].mxu0
    %1081 = vmatprep.mubr.f32.mxu0 0.0
    %1082 = vmatmul.mubr.f32.gmra.mrb[0].mxu0 %v118
    %v1083 = vpop.f32.mrb[0].mxu0
    %v1084 = vadd.f32 0.0, %v1083
    %v1085 = vpop.f32.mrb[0].mxu0
    %1086 = vmatprep.mubr.f32.mxu0 0.0
    %1087 = vmatmul.mubr.f32.gmra.mrb[0].mxu0 %v121
    %v1088 = vpop.f32.mrb[0].mxu0
    %v1089 = vadd.f32 0.0, %v1088
    %v1090 = vpop.f32.mrb[0].mxu0
    %1091 = vmatprep.mubr.f32.mxu0 0.0
    %1092 = vmatmul.mubr.f32.gmra.mrb[0].mxu0 %v124
    %v1093 = vpop.f32.mrb[0].mxu0
    %v1094 = vadd.f32 0.0, %v1093
    %v1095 = vpop.f32.mrb[0].mxu0
    %1096 = vmatprep.mubr.f32.mxu0 0.0
    %1097 = vmatmul.mubr.f32.gmra.mrb[0].mxu0 %v127
    %v1098 = vpop.f32.mrb[0].mxu0
    %v1099 = vadd.f32 0.0, %v1098
    %v1100 = vpop.f32.mrb[0].mxu0
    %1101 = vmatprep.mubr.f32.mxu0 0.0
    %1102 = vmatmul.mubr.f32.gmra.mrb[0].mxu0 %v130
    %v1103 = vpop.f32.mrb[0].mxu0
    %v1104 = vadd.f32 0.0, %v1103
    %v1105 = vpop.f32.mrb[0].mxu0
    %1106 = vmatprep.mubr.f32.mxu0 0.0
    %1107 = vmatmul.mubr.f32.gmra.mrb[0].mxu0 %v133
    %v1108 = vpop.f32.mrb[0].mxu0
    %v1109 = vadd.f32 0.0, %v1108
    %v1110 = vpop.f32.mrb[0].mxu0
    %1111 = vmatprep.mubr.f32.mxu0 0.0
    %1112 = vmatmul.mubr.f32.gmra.mrb[0].mxu0 %v136
    %v1113 = vpop.f32.mrb[0].mxu0
    %v1114 = vadd.f32 0.0, %v1113
    %v1115 = vpop.f32.mrb[0].mxu0
    %1116 = vmatprep.mubr.f32.mxu0 0.0
    %1117 = vmatmul.mubr.f32.gmra.mrb[0].mxu0 %v139
    %v1118 = vpop.f32.mrb[0].mxu0
    %v1119 = vadd.f32 0.0, %v1118
    %v1120 = vpop.f32.mrb[0].mxu0
    %1121 = vmatprep.mubr.f32.mxu0 0.0
    %1122 = vmatmul.mubr.f32.gmra.mrb[0].mxu0 %v142
    %v1123 = vpop.f32.mrb[0].mxu0
    %v1124 = vadd.f32 0.0, %v1123
    %v1125 = vpop.f32.mrb[0].mxu0
    %1126 = vmatprep.mubr.f32.mxu0 0.0
    %1127 = vmatmul.mubr.f32.gmra.mrb[0].mxu0 %v145
    %v1128 = vpop.f32.mrb[0].mxu0
    %v1129 = vadd.f32 0.0, %v1128
    %v1130 = vpop.f32.mrb[0].mxu0
    %1131 = vmatprep.mubr.f32.mxu0 0.0
    %1132 = vmatmul.mubr.f32.gmra.mrb[0].mxu0 %v148
    %v1133 = vpop.f32.mrb[0].mxu0
    %v1134 = vadd.f32 0.0, %v1133
    %v1135 = vpop.f32.mrb[0].mxu0
    %1136 = vmatprep.mubr.f32.mxu0 0.0
    %1137 = vmatmul.mubr.f32.gmra.mrb[0].mxu0 %v151
    %v1138 = vpop.f32.mrb[0].mxu0
    %v1139 = vadd.f32 0.0, %v1138
    %v1140 = vpop.f32.mrb[0].mxu0
    %1141 = vmatprep.mubr.f32.mxu0 0.0
    %1142 = vmatmul.mubr.f32.gmra.mrb[0].mxu0 %v154
    %v1143 = vpop.f32.mrb[0].mxu0
    %v1144 = vadd.f32 0.0, %v1143
    %v1145 = vpop.f32.mrb[0].mxu0
    %1146 = vmatprep.mubr.f32.mxu0 0.0
    %1147 = vmatmul.mubr.f32.gmra.mrb[0].mxu0 %v157
    %v1148 = vpop.f32.mrb[0].mxu0
    %v1149 = vadd.f32 0.0, %v1148
    %v1150 = vpop.f32.mrb[0].mxu0
    %1151 = vmatprep.mubr.f32.mxu0 0.0
    %1152 = vmatmul.mubr.f32.gmra.mrb[0].mxu0 %v160
    %v1153 = vpop.f32.mrb[0].mxu0
    %v1154 = vadd.f32 0.0, %v1153
    %v1155 = vpop.f32.mrb[0].mxu0
    %1156 = vmatprep.mubr.f32.mxu0 0.0
    %1157 = vmatmul.mubr.f32.gmra.mrb[0].mxu0 %v163
    %v1158 = vpop.f32.mrb[0].mxu0
    %v1159 = vadd.f32 0.0, %v1158
    %v1160 = vpop.f32.mrb[0].mxu0
    %1161 = vmatprep.mubr.f32.mxu0 0.0
    %1162 = vmatmul.mubr.f32.gmra.mrb[0].mxu0 %v166
    %v1163 = vpop.f32.mrb[0].mxu0
    %v1164 = vadd.f32 0.0, %v1163
    %v1165 = vpop.f32.mrb[0].mxu0
    %1166 = vmatprep.mubr.f32.mxu0 0.0
    %1167 = vmatmul.mubr.f32.gmra.mrb[0].mxu0 %v169
    %v1168 = vpop.f32.mrb[0].mxu0
    %v1169 = vadd.f32 0.0, %v1168
    %v1170 = vpop.f32.mrb[0].mxu0
    %1171 = vmatprep.mubr.f32.mxu0 0.0
    %1172 = vmatmul.mubr.f32.gmra.mrb[0].mxu0 %v557
    %v1173 = vpop.f32.mrb[0].mxu0
    %v1174 = vadd.f32 0.0, %v1173
    %v1175 = vpop.f32.mrb[0].mxu0
    %1176 = vmatprep.mubr.f32.mxu0 0.0
    %1177 = vmatmul.mubr.f32.gmra.mrb[0].mxu0 %v777
    %v1178 = vpop.f32.mrb[0].mxu0
    %v1179 = vadd.f32 0.0, %v1178
    %v1180 = vpop.f32.mrb[0].mxu0
    %1181 = vmatprep.mubr.f32.mxu0 0.0
    %1182 = vmatmul.mubr.f32.gmra.mrb[0].mxu0 %v997
    %v1183 = vpop.f32.mrb[0].mxu0
    %v1184 = vadd.f32 0.0, %v1183
    %v1185 = vpop.f32.mrb[0].mxu0
    %1186 = vdwg.mxu0
    %v1187 = vadd.f32 %v967, %v1069
    %v1188 = vadd.f32 %v968, %v1074
    %v1189 = vadd.f32 %v969, %v1079
    %v1190 = vadd.f32 %v970, %v1084
    %v1191 = vadd.f32 %v971, %v1089
    %v1192 = vadd.f32 %v972, %v1094
    %v1193 = vadd.f32 %v973, %v1099
    %v1194 = vadd.f32 %v974, %v1104
    %v1195 = vadd.f32 %v975, %v1109
    %v1196 = vadd.f32 %v976, %v1114
    %v1197 = vadd.f32 %v977, %v1119
    %v1198 = vadd.f32 %v978, %v1124
    %v1199 = vadd.f32 %v979, %v1129
    %v1200 = vadd.f32 %v980, %v1134
    %v1201 = vadd.f32 %v981, %v1139
    %v1202 = vadd.f32 %v982, %v1144
    %v1203 = vadd.f32 %v983, %v1149
    %v1204 = vadd.f32 %v984, %v1154
    %v1205 = vadd.f32 %v985, %v1159
    %v1206 = vadd.f32 %v986, %v1164
    %v1207 = vadd.f32 %v987, %v1169
    %v1208 = vadd.f32 %v988, %v1174
    %v1209 = vadd.f32 %v989, %v1179
    %v1210 = vadd.f32 %v990, %v1184
    %v1211 = vld [vmem:[%s2] sm:$0x1]
    %v1213 = vlaneseq
    %v1214 = vshrl.u32 %v1213, 7
    %v1215 = vsub.s32 0, %v1214
    %v1216 = vrot.slane %v1211, %v1215
    %v1218 = vadd.f32 %v1187, %v1216
    %v1219 = vadd.f32 %v1188, %v1216
    %v1220 = vadd.f32 %v1189, %v1216
    %v1221 = vadd.f32 %v1190, %v1216
    %v1222 = vadd.f32 %v1191, %v1216
    %v1223 = vadd.f32 %v1192, %v1216
    %v1224 = vadd.f32 %v1193, %v1216
    %v1225 = vadd.f32 %v1194, %v1216
    %v1226 = vadd.f32 %v1195, %v1216
    %v1227 = vadd.f32 %v1196, %v1216
    %v1228 = vadd.f32 %v1197, %v1216
    %v1229 = vadd.f32 %v1198, %v1216
    %v1230 = vadd.f32 %v1199, %v1216
    %v1231 = vadd.f32 %v1200, %v1216
    %v1232 = vadd.f32 %v1201, %v1216
    %v1233 = vadd.f32 %v1202, %v1216
    %v1234 = vadd.f32 %v1203, %v1216
    %v1235 = vadd.f32 %v1204, %v1216
    %v1236 = vadd.f32 %v1205, %v1216
    %v1237 = vadd.f32 %v1206, %v1216
    %v1238 = vadd.f32 %v1207, %v1216
    %v1239 = vadd.f32 %v1208, %v1216
    %v1240 = vadd.f32 %v1209, %v1216
    %v1241 = vadd.f32 %v1210, %v1216
    %v1242 = vmax.f32 %v1218, %v1219
    %v1243 = vmax.f32 %v1220, %v1221
    %v1244 = vmax.f32 %v1222, %v1223
    %v1245 = vmax.f32 %v1224, %v1225
    %v1246 = vmax.f32 %v1226, %v1227
    %v1247 = vmax.f32 %v1228, %v1229
    %v1248 = vmax.f32 %v1230, %v1231
    %v1249 = vmax.f32 %v1232, %v1233
    %v1250 = vmax.f32 %v1234, %v1235
    %v1251 = vmax.f32 %v1236, %v1237
    %v1252 = vmax.f32 %v1238, %v1239
    %v1253 = vmax.f32 %v1240, %v1241
    %1266 = vrot.lane.b32.xlu0 %v1242, 92
    %v1267 = vpop.permute.xlu0 %1266
    %1268 = vrot.lane.b32.xlu0 %v1243, 92
    %v1269 = vpop.permute.xlu0 %1268
    %1270 = vrot.lane.b32.xlu0 %v1244, 92
    %v1271 = vpop.permute.xlu0 %1270
    %1272 = vrot.lane.b32.xlu0 %v1245, 92
    %v1273 = vpop.permute.xlu0 %1272
    %1274 = vrot.lane.b32.xlu0 %v1246, 92
    %v1275 = vpop.permute.xlu0 %1274
    %1276 = vrot.lane.b32.xlu0 %v1247, 92
    %v1277 = vpop.permute.xlu0 %1276
    %1278 = vrot.lane.b32.xlu0 %v1248, 92
    %v1279 = vpop.permute.xlu0 %1278
    %1280 = vrot.lane.b32.xlu0 %v1249, 92
    %v1281 = vpop.permute.xlu0 %1280
    %1282 = vrot.lane.b32.xlu0 %v1250, 92
    %v1283 = vpop.permute.xlu0 %1282
    %1284 = vrot.lane.b32.xlu0 %v1251, 92
    %v1285 = vpop.permute.xlu0 %1284
    %1286 = vrot.lane.b32.xlu0 %v1252, 92
    %v1287 = vpop.permute.xlu0 %1286
    %1288 = vrot.lane.b32.xlu0 %v1253, 92
    %v1289 = vpop.permute.xlu0 %1288
    %v1302 = vmax.f32 %v1242, %v1267
    %v1303 = vmax.f32 %v1243, %v1269
    %v1304 = vmax.f32 %v1244, %v1271
    %v1305 = vmax.f32 %v1245, %v1273
    %v1306 = vmax.f32 %v1246, %v1275
    %v1307 = vmax.f32 %v1247, %v1277
    %v1308 = vmax.f32 %v1248, %v1279
    %v1309 = vmax.f32 %v1249, %v1281
    %v1310 = vmax.f32 %v1250, %v1283
    %v1311 = vmax.f32 %v1251, %v1285
    %v1312 = vmax.f32 %v1252, %v1287
    %v1313 = vmax.f32 %v1253, %v1289
    %v1314 = vmax.f32 %v1302, 0.0
    %v1315 = vmax.f32 %v1303, 0.0
    %v1316 = vmax.f32 %v1304, 0.0
    %v1317 = vmax.f32 %v1305, 0.0
    %v1318 = vmax.f32 %v1306, 0.0
    %v1319 = vmax.f32 %v1307, 0.0
    %v1320 = vmax.f32 %v1308, 0.0
    %v1321 = vmax.f32 %v1309, 0.0
    %v1322 = vmax.f32 %v1310, 0.0
    %v1323 = vmax.f32 %v1311, 0.0
    %v1324 = vmax.f32 %v1312, 0.0
    %v1325 = vmax.f32 %v1313, 0.0
    %v1326 = vld [vmem:[%s3] sm:$0xff]
    %v1327 = vld [vmem:[%s3 + $0x8] sm:$0xff]
    %v1328 = vld [vmem:[%s3 + $0x10] sm:$0xff]
    %v1329 = vld [vmem:[%s3 + $0x18] sm:$0xff]
    %v1330 = vld [vmem:[%s3 + $0x20] sm:$0xff]
    %v1331 = vld [vmem:[%s3 + $0x28] sm:$0xff]
    %v1332 = vld [vmem:[%s3 + $0x30] sm:$0xff]
    %v1333 = vld [vmem:[%s3 + $0x38] sm:$0xff]
    %v1334 = vld [vmem:[%s3 + $0x40] sm:$0xf]
    %v1335 = vld [vmem:[%s3 + $0x48] sm:$0xf]
    %s1336 = scalar_lea.vmem %s3, 80
    %v1337 = vld [vmem:[%s1336] sm:$0xff]
    %v1338 = vld [vmem:[%s1336 + $0x8] sm:$0xff]
    %v1339 = vld [vmem:[%s1336 + $0x10] sm:$0xff]
    %v1340 = vld [vmem:[%s1336 + $0x18] sm:$0xff]
    %v1341 = vld [vmem:[%s1336 + $0x20] sm:$0xff]
    %v1342 = vld [vmem:[%s1336 + $0x28] sm:$0xff]
    %v1343 = vld [vmem:[%s1336 + $0x30] sm:$0xff]
    %v1344 = vld [vmem:[%s1336 + $0x38] sm:$0xff]
    %v1345 = vld [vmem:[%s1336 + $0x40] sm:$0xf]
    %v1346 = vld [vmem:[%s1336 + $0x48] sm:$0xf]
    %vm1347 = vcmask 293888
    %v1349 = vsel %vm1347, %v1315, 0
    %v1352 = vsel %vm1347, %v1316, 0
    %v1355 = vsel %vm1347, %v1317, 0
    %v1358 = vsel %vm1347, %v1318, 0
    %v1361 = vsel %vm1347, %v1319, 0
    %v1364 = vsel %vm1347, %v1320, 0
    %v1367 = vsel %vm1347, %v1321, 0
    %v1370 = vsel %vm1347, %v1322, 0
    %v1373 = vsel %vm171, %v1345, 0
    %v1376 = vsel %vm171, %v1346, 0
    %1378 = vmatprep.subr.mxu0 %v1338
    %1379 = vmatpush1.msra.mxu0 %v1337
    %1380 = vmatprep.subr.mxu0 %v1340
    %1381 = vmatpush1.msra.mxu0 %v1339
    %1382 = vmatprep.subr.mxu0 %v1342
    %1383 = vmatpush1.msra.mxu0 %v1341
    %1384 = vmatprep.subr.mxu0 %v1344
    %1385 = vmatpush1.msra.mxu0 %v1343
    %1386 = vmatprep.subr.mxu0 %v1376
    %1387 = vmatpush1.msra.mxu0 %v1373
    %1388 = vmatprep.subr.mxu0 0.0
    %1389 = vmatpush1.msra.mxu0 0.0
    %1390 = vmatprep.subr.mxu0 0.0
    %1391 = vmatpush1.msra.mxu0 0.0
    %1392 = vmatprep.subr.mxu0 0.0
    %1393 = vmatpush1.msra.mxu0 0.0
    %1394 = vmatprep.subr.mxu0 0.0
    %1395 = vmatpush1.msra.mxu0 0.0
    %1396 = vmatprep.subr.mxu0 0.0
    %1397 = vmatpush1.msra.mxu0 0.0
    %1398 = vmatprep.subr.mxu0 0.0
    %1399 = vmatpush1.msra.mxu0 0.0
    %1400 = vmatprep.subr.mxu0 0.0
    %1401 = vmatpush1.msra.mxu0 0.0
    %1402 = vmatprep.subr.mxu0 0.0
    %1403 = vmatpush1.msra.mxu0 0.0
    %1404 = vmatprep.subr.mxu0 0.0
    %1405 = vmatpush1.msra.mxu0 0.0
    %1406 = vmatprep.subr.mxu0 0.0
    %1407 = vmatpush1.msra.mxu0 0.0
    %1408 = vmatprep.subr.mxu0 0.0
    %1409 = vmatpush1.msra.mxu0 0.0
    %1410 = vmatprep.subr.mxu0 0.0
    %1411 = vmatpush1.msra.mxu0 0.0
    %1412 = vmatprep.subr.mxu0 0.0
    %1413 = vmatpush1.msra.mxu0 0.0
    %1414 = vmatprep.subr.mxu0 0.0
    %1415 = vmatpush1.msra.mxu0 0.0
    %1416 = vmatprep.subr.mxu0 0.0
    %1417 = vmatpush1.msra.mxu0 0.0
    %1418 = vmatprep.subr.mxu0 0.0
    %1419 = vmatpush1.msra.mxu0 0.0
    %1420 = vmatprep.subr.mxu0 0.0
    %1421 = vmatpush1.msra.mxu0 0.0
    %1422 = vmatprep.subr.mxu0 0.0
    %1423 = vmatpush1.msra.mxu0 0.0
    %1424 = vmatprep.subr.mxu0 0.0
    %1425 = vmatpush1.msra.mxu0 0.0
    %1426 = vmatprep.subr.mxu0 0.0
    %1427 = vmatpush1.msra.mxu0 0.0
    %1428 = vmatprep.subr.mxu0 0.0
    %1429 = vmatpush1.msra.mxu0 0.0
    %1430 = vmatprep.subr.mxu0 0.0
    %1431 = vmatpush1.msra.mxu0 0.0
    %1432 = vmatprep.subr.mxu0 0.0
    %1433 = vmatpush1.msra.mxu0 0.0
    %1434 = vmatprep.subr.mxu0 0.0
    %1435 = vmatpush1.msra.mxu0 0.0
    %1436 = vmatprep.subr.mxu0 0.0
    %1437 = vmatpush1.msra.mxu0 0.0
    %1438 = vmatprep.subr.mxu0 0.0
    %1439 = vmatpush1.msra.mxu0 0.0
    %1440 = vmatprep.subr.mxu0 0.0
    %1441 = vmatpush1.msra.mxu0 0.0
    %1442 = vmatprep.mubr.f32.mxu0 0.0
    %1443 = vmatmul.mubr.f32.gmra.mrb[0].mxu0 %v1349
    %v1444 = vpop.f32.mrb[0].mxu0
    %v1445 = vadd.f32 0.0, %v1444
    %v1446 = vpop.f32.mrb[0].mxu0
    %v1447 = vadd.f32 0.0, %v1446
    %1448 = vmatprep.mubr.f32.mxu0 0.0
    %1449 = vmatmul.mubr.f32.gmra.mrb[0].mxu0 %v1352
    %v1450 = vpop.f32.mrb[0].mxu0
    %v1451 = vadd.f32 0.0, %v1450
    %v1452 = vpop.f32.mrb[0].mxu0
    %v1453 = vadd.f32 0.0, %v1452
    %1454 = vmatprep.mubr.f32.mxu0 0.0
    %1455 = vmatmul.mubr.f32.gmra.mrb[0].mxu0 %v1355
    %v1456 = vpop.f32.mrb[0].mxu0
    %v1457 = vadd.f32 0.0, %v1456
    %v1458 = vpop.f32.mrb[0].mxu0
    %v1459 = vadd.f32 0.0, %v1458
    %1460 = vmatprep.mubr.f32.mxu0 0.0
    %1461 = vmatmul.mubr.f32.gmra.mrb[0].mxu0 %v1358
    %v1462 = vpop.f32.mrb[0].mxu0
    %v1463 = vadd.f32 0.0, %v1462
    %v1464 = vpop.f32.mrb[0].mxu0
    %v1465 = vadd.f32 0.0, %v1464
    %1466 = vmatprep.mubr.f32.mxu0 0.0
    %1467 = vmatmul.mubr.f32.gmra.mrb[0].mxu0 %v1361
    %v1468 = vpop.f32.mrb[0].mxu0
    %v1469 = vadd.f32 0.0, %v1468
    %v1470 = vpop.f32.mrb[0].mxu0
    %v1471 = vadd.f32 0.0, %v1470
    %1472 = vmatprep.mubr.f32.mxu0 0.0
    %1473 = vmatmul.mubr.f32.gmra.mrb[0].mxu0 %v1364
    %v1474 = vpop.f32.mrb[0].mxu0
    %v1475 = vadd.f32 0.0, %v1474
    %v1476 = vpop.f32.mrb[0].mxu0
    %v1477 = vadd.f32 0.0, %v1476
    %1478 = vmatprep.mubr.f32.mxu0 0.0
    %1479 = vmatmul.mubr.f32.gmra.mrb[0].mxu0 %v1367
    %v1480 = vpop.f32.mrb[0].mxu0
    %v1481 = vadd.f32 0.0, %v1480
    %v1482 = vpop.f32.mrb[0].mxu0
    %v1483 = vadd.f32 0.0, %v1482
    %1484 = vmatprep.mubr.f32.mxu0 0.0
    %1485 = vmatmul.mubr.f32.gmra.mrb[0].mxu0 %v1370
    %v1486 = vpop.f32.mrb[0].mxu0
    %v1487 = vadd.f32 0.0, %v1486
    %v1488 = vpop.f32.mrb[0].mxu0
    %v1489 = vadd.f32 0.0, %v1488
    %1490 = vdwg.mxu0
    %v1492 = vsel %vm1347, %v1314, 0
    %v1495 = vsel %vm171, %v1334, 0
    %v1498 = vsel %vm171, %v1335, 0
    %1500 = vmatprep.subr.mxu0 %v1327
    %1501 = vmatpush1.msra.mxu0 %v1326
    %1502 = vmatprep.subr.mxu0 %v1329
    %1503 = vmatpush1.msra.mxu0 %v1328
    %1504 = vmatprep.subr.mxu0 %v1331
    %1505 = vmatpush1.msra.mxu0 %v1330
    %1506 = vmatprep.subr.mxu0 %v1333
    %1507 = vmatpush1.msra.mxu0 %v1332
    %1508 = vmatprep.subr.mxu0 %v1498
    %1509 = vmatpush1.msra.mxu0 %v1495
    %1510 = vmatprep.subr.mxu0 0.0
    %1511 = vmatpush1.msra.mxu0 0.0
    %1512 = vmatprep.subr.mxu0 0.0
    %1513 = vmatpush1.msra.mxu0 0.0
    %1514 = vmatprep.subr.mxu0 0.0
    %1515 = vmatpush1.msra.mxu0 0.0
    %1516 = vmatprep.subr.mxu0 0.0
    %1517 = vmatpush1.msra.mxu0 0.0
    %1518 = vmatprep.subr.mxu0 0.0
    %1519 = vmatpush1.msra.mxu0 0.0
    %1520 = vmatprep.subr.mxu0 0.0
    %1521 = vmatpush1.msra.mxu0 0.0
    %1522 = vmatprep.subr.mxu0 0.0
    %1523 = vmatpush1.msra.mxu0 0.0
    %1524 = vmatprep.subr.mxu0 0.0
    %1525 = vmatpush1.msra.mxu0 0.0
    %1526 = vmatprep.subr.mxu0 0.0
    %1527 = vmatpush1.msra.mxu0 0.0
    %1528 = vmatprep.subr.mxu0 0.0
    %1529 = vmatpush1.msra.mxu0 0.0
    %1530 = vmatprep.subr.mxu0 0.0
    %1531 = vmatpush1.msra.mxu0 0.0
    %1532 = vmatprep.subr.mxu0 0.0
    %1533 = vmatpush1.msra.mxu0 0.0
    %1534 = vmatprep.subr.mxu0 0.0
    %1535 = vmatpush1.msra.mxu0 0.0
    %1536 = vmatprep.subr.mxu0 0.0
    %1537 = vmatpush1.msra.mxu0 0.0
    %1538 = vmatprep.subr.mxu0 0.0
    %1539 = vmatpush1.msra.mxu0 0.0
    %1540 = vmatprep.subr.mxu0 0.0
    %1541 = vmatpush1.msra.mxu0 0.0
    %1542 = vmatprep.subr.mxu0 0.0
    %1543 = vmatpush1.msra.mxu0 0.0
    %1544 = vmatprep.subr.mxu0 0.0
    %1545 = vmatpush1.msra.mxu0 0.0
    %1546 = vmatprep.subr.mxu0 0.0
    %1547 = vmatpush1.msra.mxu0 0.0
    %1548 = vmatprep.subr.mxu0 0.0
    %1549 = vmatpush1.msra.mxu0 0.0
    %1550 = vmatprep.subr.mxu0 0.0
    %1551 = vmatpush1.msra.mxu0 0.0
    %1552 = vmatprep.subr.mxu0 0.0
    %1553 = vmatpush1.msra.mxu0 0.0
    %1554 = vmatprep.subr.mxu0 0.0
    %1555 = vmatpush1.msra.mxu0 0.0
    %1556 = vmatprep.subr.mxu0 0.0
    %1557 = vmatpush1.msra.mxu0 0.0
    %1558 = vmatprep.subr.mxu0 0.0
    %1559 = vmatpush1.msra.mxu0 0.0
    %1560 = vmatprep.subr.mxu0 0.0
    %1561 = vmatpush1.msra.mxu0 0.0
    %1562 = vmatprep.subr.mxu0 0.0
    %1563 = vmatpush1.msra.mxu0 0.0
    %1564 = vmatprep.mubr.f32.mxu0 0.0
    %1565 = vmatmul.mubr.f32.gmra.mrb[0].mxu0 %v1492
    %v1566 = vpop.f32.mrb[0].mxu0
    %v1567 = vadd.f32 %v1445, %v1566
    %v1568 = vpop.f32.mrb[0].mxu0
    %v1569 = vadd.f32 %v1447, %v1568
    %1570 = vmatprep.mubr.f32.mxu0 0.0
    %1571 = vmatmul.mubr.f32.gmra.mrb[0].mxu0 %v1349
    %v1572 = vpop.f32.mrb[0].mxu0
    %v1573 = vadd.f32 %v1451, %v1572
    %v1574 = vpop.f32.mrb[0].mxu0
    %v1575 = vadd.f32 %v1453, %v1574
    %1576 = vmatprep.mubr.f32.mxu0 0.0
    %1577 = vmatmul.mubr.f32.gmra.mrb[0].mxu0 %v1352
    %v1578 = vpop.f32.mrb[0].mxu0
    %v1579 = vadd.f32 %v1457, %v1578
    %v1580 = vpop.f32.mrb[0].mxu0
    %v1581 = vadd.f32 %v1459, %v1580
    %1582 = vmatprep.mubr.f32.mxu0 0.0
    %1583 = vmatmul.mubr.f32.gmra.mrb[0].mxu0 %v1355
    %v1584 = vpop.f32.mrb[0].mxu0
    %v1585 = vadd.f32 %v1463, %v1584
    %v1586 = vpop.f32.mrb[0].mxu0
    %v1587 = vadd.f32 %v1465, %v1586
    %1588 = vmatprep.mubr.f32.mxu0 0.0
    %1589 = vmatmul.mubr.f32.gmra.mrb[0].mxu0 %v1358
    %v1590 = vpop.f32.mrb[0].mxu0
    %v1591 = vadd.f32 %v1469, %v1590
    %v1592 = vpop.f32.mrb[0].mxu0
    %v1593 = vadd.f32 %v1471, %v1592
    %1594 = vmatprep.mubr.f32.mxu0 0.0
    %1595 = vmatmul.mubr.f32.gmra.mrb[0].mxu0 %v1361
    %v1596 = vpop.f32.mrb[0].mxu0
    %v1597 = vadd.f32 %v1475, %v1596
    %v1598 = vpop.f32.mrb[0].mxu0
    %v1599 = vadd.f32 %v1477, %v1598
    %1600 = vmatprep.mubr.f32.mxu0 0.0
    %1601 = vmatmul.mubr.f32.gmra.mrb[0].mxu0 %v1364
    %v1602 = vpop.f32.mrb[0].mxu0
    %v1603 = vadd.f32 %v1481, %v1602
    %v1604 = vpop.f32.mrb[0].mxu0
    %v1605 = vadd.f32 %v1483, %v1604
    %1606 = vmatprep.mubr.f32.mxu0 0.0
    %1607 = vmatmul.mubr.f32.gmra.mrb[0].mxu0 %v1367
    %v1608 = vpop.f32.mrb[0].mxu0
    %v1609 = vadd.f32 %v1487, %v1608
    %v1610 = vpop.f32.mrb[0].mxu0
    %v1611 = vadd.f32 %v1489, %v1610
    %1612 = vdwg.mxu0
    %s1613 = scalar_lea.vmem %s3, 160
    %v1614 = vld [vmem:[%s1613] sm:$0xff]
    %v1615 = vld [vmem:[%s1613 + $0x8] sm:$0xff]
    %v1616 = vld [vmem:[%s1613 + $0x10] sm:$0xff]
    %v1617 = vld [vmem:[%s1613 + $0x18] sm:$0xff]
    %v1618 = vld [vmem:[%s1613 + $0x20] sm:$0xff]
    %v1619 = vld [vmem:[%s1613 + $0x28] sm:$0xff]
    %v1620 = vld [vmem:[%s1613 + $0x30] sm:$0xff]
    %v1621 = vld [vmem:[%s1613 + $0x38] sm:$0xff]
    %v1622 = vld [vmem:[%s1613 + $0x40] sm:$0xf]
    %v1623 = vld [vmem:[%s1613 + $0x48] sm:$0xf]
    %v1625 = vsel %vm1347, %v1323, 0
    %v1628 = vsel %vm171, %v1622, 0
    %v1631 = vsel %vm171, %v1623, 0
    %1633 = vmatprep.subr.mxu0 %v1615
    %1634 = vmatpush1.msra.mxu0 %v1614
    %1635 = vmatprep.subr.mxu0 %v1617
    %1636 = vmatpush1.msra.mxu0 %v1616
    %1637 = vmatprep.subr.mxu0 %v1619
    %1638 = vmatpush1.msra.mxu0 %v1618
    %1639 = vmatprep.subr.mxu0 %v1621
    %1640 = vmatpush1.msra.mxu0 %v1620
    %1641 = vmatprep.subr.mxu0 %v1631
    %1642 = vmatpush1.msra.mxu0 %v1628
    %1643 = vmatprep.subr.mxu0 0.0
    %1644 = vmatpush1.msra.mxu0 0.0
    %1645 = vmatprep.subr.mxu0 0.0
    %1646 = vmatpush1.msra.mxu0 0.0
    %1647 = vmatprep.subr.mxu0 0.0
    %1648 = vmatpush1.msra.mxu0 0.0
    %1649 = vmatprep.subr.mxu0 0.0
    %1650 = vmatpush1.msra.mxu0 0.0
    %1651 = vmatprep.subr.mxu0 0.0
    %1652 = vmatpush1.msra.mxu0 0.0
    %1653 = vmatprep.subr.mxu0 0.0
    %1654 = vmatpush1.msra.mxu0 0.0
    %1655 = vmatprep.subr.mxu0 0.0
    %1656 = vmatpush1.msra.mxu0 0.0
    %1657 = vmatprep.subr.mxu0 0.0
    %1658 = vmatpush1.msra.mxu0 0.0
    %1659 = vmatprep.subr.mxu0 0.0
    %1660 = vmatpush1.msra.mxu0 0.0
    %1661 = vmatprep.subr.mxu0 0.0
    %1662 = vmatpush1.msra.mxu0 0.0
    %1663 = vmatprep.subr.mxu0 0.0
    %1664 = vmatpush1.msra.mxu0 0.0
    %1665 = vmatprep.subr.mxu0 0.0
    %1666 = vmatpush1.msra.mxu0 0.0
    %1667 = vmatprep.subr.mxu0 0.0
    %1668 = vmatpush1.msra.mxu0 0.0
    %1669 = vmatprep.subr.mxu0 0.0
    %1670 = vmatpush1.msra.mxu0 0.0
    %1671 = vmatprep.subr.mxu0 0.0
    %1672 = vmatpush1.msra.mxu0 0.0
    %1673 = vmatprep.subr.mxu0 0.0
    %1674 = vmatpush1.msra.mxu0 0.0
    %1675 = vmatprep.subr.mxu0 0.0
    %1676 = vmatpush1.msra.mxu0 0.0
    %1677 = vmatprep.subr.mxu0 0.0
    %1678 = vmatpush1.msra.mxu0 0.0
    %1679 = vmatprep.subr.mxu0 0.0
    %1680 = vmatpush1.msra.mxu0 0.0
    %1681 = vmatprep.subr.mxu0 0.0
    %1682 = vmatpush1.msra.mxu0 0.0
    %1683 = vmatprep.subr.mxu0 0.0
    %1684 = vmatpush1.msra.mxu0 0.0
    %1685 = vmatprep.subr.mxu0 0.0
    %1686 = vmatpush1.msra.mxu0 0.0
    %1687 = vmatprep.subr.mxu0 0.0
    %1688 = vmatpush1.msra.mxu0 0.0
    %1689 = vmatprep.subr.mxu0 0.0
    %1690 = vmatpush1.msra.mxu0 0.0
    %1691 = vmatprep.subr.mxu0 0.0
    %1692 = vmatpush1.msra.mxu0 0.0
    %1693 = vmatprep.subr.mxu0 0.0
    %1694 = vmatpush1.msra.mxu0 0.0
    %1695 = vmatprep.subr.mxu0 0.0
    %1696 = vmatpush1.msra.mxu0 0.0
    %1697 = vmatprep.mubr.f32.mxu0 0.0
    %1698 = vmatmul.mubr.f32.gmra.mrb[0].mxu0 %v1352
    %v1699 = vpop.f32.mrb[0].mxu0
    %v1700 = vadd.f32 0.0, %v1699
    %v1701 = vpop.f32.mrb[0].mxu0
    %v1702 = vadd.f32 0.0, %v1701
    %1703 = vmatprep.mubr.f32.mxu0 0.0
    %1704 = vmatmul.mubr.f32.gmra.mrb[0].mxu0 %v1355
    %v1705 = vpop.f32.mrb[0].mxu0
    %v1706 = vadd.f32 0.0, %v1705
    %v1707 = vpop.f32.mrb[0].mxu0
    %v1708 = vadd.f32 0.0, %v1707
    %1709 = vmatprep.mubr.f32.mxu0 0.0
    %1710 = vmatmul.mubr.f32.gmra.mrb[0].mxu0 %v1358
    %v1711 = vpop.f32.mrb[0].mxu0
    %v1712 = vadd.f32 0.0, %v1711
    %v1713 = vpop.f32.mrb[0].mxu0
    %v1714 = vadd.f32 0.0, %v1713
    %1715 = vmatprep.mubr.f32.mxu0 0.0
    %1716 = vmatmul.mubr.f32.gmra.mrb[0].mxu0 %v1361
    %v1717 = vpop.f32.mrb[0].mxu0
    %v1718 = vadd.f32 0.0, %v1717
    %v1719 = vpop.f32.mrb[0].mxu0
    %v1720 = vadd.f32 0.0, %v1719
    %1721 = vmatprep.mubr.f32.mxu0 0.0
    %1722 = vmatmul.mubr.f32.gmra.mrb[0].mxu0 %v1364
    %v1723 = vpop.f32.mrb[0].mxu0
    %v1724 = vadd.f32 0.0, %v1723
    %v1725 = vpop.f32.mrb[0].mxu0
    %v1726 = vadd.f32 0.0, %v1725
    %1727 = vmatprep.mubr.f32.mxu0 0.0
    %1728 = vmatmul.mubr.f32.gmra.mrb[0].mxu0 %v1367
    %v1729 = vpop.f32.mrb[0].mxu0
    %v1730 = vadd.f32 0.0, %v1729
    %v1731 = vpop.f32.mrb[0].mxu0
    %v1732 = vadd.f32 0.0, %v1731
    %1733 = vmatprep.mubr.f32.mxu0 0.0
    %1734 = vmatmul.mubr.f32.gmra.mrb[0].mxu0 %v1370
    %v1735 = vpop.f32.mrb[0].mxu0
    %v1736 = vadd.f32 0.0, %v1735
    %v1737 = vpop.f32.mrb[0].mxu0
    %v1738 = vadd.f32 0.0, %v1737
    %1739 = vmatprep.mubr.f32.mxu0 0.0
    %1740 = vmatmul.mubr.f32.gmra.mrb[0].mxu0 %v1625
    %v1741 = vpop.f32.mrb[0].mxu0
    %v1742 = vadd.f32 0.0, %v1741
    %v1743 = vpop.f32.mrb[0].mxu0
    %v1744 = vadd.f32 0.0, %v1743
    %1745 = vdwg.mxu0
    %v1746 = vadd.f32 %v1567, %v1700
    %v1747 = vadd.f32 %v1569, %v1702
    %v1748 = vadd.f32 %v1573, %v1706
    %v1749 = vadd.f32 %v1575, %v1708
    %v1750 = vadd.f32 %v1579, %v1712
    %v1751 = vadd.f32 %v1581, %v1714
    %v1752 = vadd.f32 %v1585, %v1718
    %v1753 = vadd.f32 %v1587, %v1720
    %v1754 = vadd.f32 %v1591, %v1724
    %v1755 = vadd.f32 %v1593, %v1726
    %v1756 = vadd.f32 %v1597, %v1730
    %v1757 = vadd.f32 %v1599, %v1732
    %v1758 = vadd.f32 %v1603, %v1736
    %v1759 = vadd.f32 %v1605, %v1738
    %v1760 = vadd.f32 %v1609, %v1742
    %v1761 = vadd.f32 %v1611, %v1744
    %s1762 = scalar_lea.vmem %s3, 240
    %v1763 = vld [vmem:[%s1762] sm:$0xff]
    %v1764 = vld [vmem:[%s1762 + $0x8] sm:$0xff]
    %v1765 = vld [vmem:[%s1762 + $0x10] sm:$0xff]
    %v1766 = vld [vmem:[%s1762 + $0x18] sm:$0xff]
    %v1767 = vld [vmem:[%s1762 + $0x20] sm:$0xff]
    %v1768 = vld [vmem:[%s1762 + $0x28] sm:$0xff]
    %v1769 = vld [vmem:[%s1762 + $0x30] sm:$0xff]
    %v1770 = vld [vmem:[%s1762 + $0x38] sm:$0xff]
    %v1771 = vld [vmem:[%s1762 + $0x40] sm:$0xf]
    %v1772 = vld [vmem:[%s1762 + $0x48] sm:$0xf]
    %v1774 = vsel %vm1347, %v1324, 0
    %v1777 = vsel %vm171, %v1771, 0
    %v1780 = vsel %vm171, %v1772, 0
    %1782 = vmatprep.subr.mxu0 %v1764
    %1783 = vmatpush1.msra.mxu0 %v1763
    %1784 = vmatprep.subr.mxu0 %v1766
    %1785 = vmatpush1.msra.mxu0 %v1765
    %1786 = vmatprep.subr.mxu0 %v1768
    %1787 = vmatpush1.msra.mxu0 %v1767
    %1788 = vmatprep.subr.mxu0 %v1770
    %1789 = vmatpush1.msra.mxu0 %v1769
    %1790 = vmatprep.subr.mxu0 %v1780
    %1791 = vmatpush1.msra.mxu0 %v1777
    %1792 = vmatprep.subr.mxu0 0.0
    %1793 = vmatpush1.msra.mxu0 0.0
    %1794 = vmatprep.subr.mxu0 0.0
    %1795 = vmatpush1.msra.mxu0 0.0
    %1796 = vmatprep.subr.mxu0 0.0
    %1797 = vmatpush1.msra.mxu0 0.0
    %1798 = vmatprep.subr.mxu0 0.0
    %1799 = vmatpush1.msra.mxu0 0.0
    %1800 = vmatprep.subr.mxu0 0.0
    %1801 = vmatpush1.msra.mxu0 0.0
    %1802 = vmatprep.subr.mxu0 0.0
    %1803 = vmatpush1.msra.mxu0 0.0
    %1804 = vmatprep.subr.mxu0 0.0
    %1805 = vmatpush1.msra.mxu0 0.0
    %1806 = vmatprep.subr.mxu0 0.0
    %1807 = vmatpush1.msra.mxu0 0.0
    %1808 = vmatprep.subr.mxu0 0.0
    %1809 = vmatpush1.msra.mxu0 0.0
    %1810 = vmatprep.subr.mxu0 0.0
    %1811 = vmatpush1.msra.mxu0 0.0
    %1812 = vmatprep.subr.mxu0 0.0
    %1813 = vmatpush1.msra.mxu0 0.0
    %1814 = vmatprep.subr.mxu0 0.0
    %1815 = vmatpush1.msra.mxu0 0.0
    %1816 = vmatprep.subr.mxu0 0.0
    %1817 = vmatpush1.msra.mxu0 0.0
    %1818 = vmatprep.subr.mxu0 0.0
    %1819 = vmatpush1.msra.mxu0 0.0
    %1820 = vmatprep.subr.mxu0 0.0
    %1821 = vmatpush1.msra.mxu0 0.0
    %1822 = vmatprep.subr.mxu0 0.0
    %1823 = vmatpush1.msra.mxu0 0.0
    %1824 = vmatprep.subr.mxu0 0.0
    %1825 = vmatpush1.msra.mxu0 0.0
    %1826 = vmatprep.subr.mxu0 0.0
    %1827 = vmatpush1.msra.mxu0 0.0
    %1828 = vmatprep.subr.mxu0 0.0
    %1829 = vmatpush1.msra.mxu0 0.0
    %1830 = vmatprep.subr.mxu0 0.0
    %1831 = vmatpush1.msra.mxu0 0.0
    %1832 = vmatprep.subr.mxu0 0.0
    %1833 = vmatpush1.msra.mxu0 0.0
    %1834 = vmatprep.subr.mxu0 0.0
    %1835 = vmatpush1.msra.mxu0 0.0
    %1836 = vmatprep.subr.mxu0 0.0
    %1837 = vmatpush1.msra.mxu0 0.0
    %1838 = vmatprep.subr.mxu0 0.0
    %1839 = vmatpush1.msra.mxu0 0.0
    %1840 = vmatprep.subr.mxu0 0.0
    %1841 = vmatpush1.msra.mxu0 0.0
    %1842 = vmatprep.subr.mxu0 0.0
    %1843 = vmatpush1.msra.mxu0 0.0
    %1844 = vmatprep.subr.mxu0 0.0
    %1845 = vmatpush1.msra.mxu0 0.0
    %1846 = vmatprep.mubr.f32.mxu0 0.0
    %1847 = vmatmul.mubr.f32.gmra.mrb[0].mxu0 %v1355
    %v1848 = vpop.f32.mrb[0].mxu0
    %v1849 = vadd.f32 0.0, %v1848
    %v1850 = vpop.f32.mrb[0].mxu0
    %v1851 = vadd.f32 0.0, %v1850
    %1852 = vmatprep.mubr.f32.mxu0 0.0
    %1853 = vmatmul.mubr.f32.gmra.mrb[0].mxu0 %v1358
    %v1854 = vpop.f32.mrb[0].mxu0
    %v1855 = vadd.f32 0.0, %v1854
    %v1856 = vpop.f32.mrb[0].mxu0
    %v1857 = vadd.f32 0.0, %v1856
    %1858 = vmatprep.mubr.f32.mxu0 0.0
    %1859 = vmatmul.mubr.f32.gmra.mrb[0].mxu0 %v1361
    %v1860 = vpop.f32.mrb[0].mxu0
    %v1861 = vadd.f32 0.0, %v1860
    %v1862 = vpop.f32.mrb[0].mxu0
    %v1863 = vadd.f32 0.0, %v1862
    %1864 = vmatprep.mubr.f32.mxu0 0.0
    %1865 = vmatmul.mubr.f32.gmra.mrb[0].mxu0 %v1364
    %v1866 = vpop.f32.mrb[0].mxu0
    %v1867 = vadd.f32 0.0, %v1866
    %v1868 = vpop.f32.mrb[0].mxu0
    %v1869 = vadd.f32 0.0, %v1868
    %1870 = vmatprep.mubr.f32.mxu0 0.0
    %1871 = vmatmul.mubr.f32.gmra.mrb[0].mxu0 %v1367
    %v1872 = vpop.f32.mrb[0].mxu0
    %v1873 = vadd.f32 0.0, %v1872
    %v1874 = vpop.f32.mrb[0].mxu0
    %v1875 = vadd.f32 0.0, %v1874
    %1876 = vmatprep.mubr.f32.mxu0 0.0
    %1877 = vmatmul.mubr.f32.gmra.mrb[0].mxu0 %v1370
    %v1878 = vpop.f32.mrb[0].mxu0
    %v1879 = vadd.f32 0.0, %v1878
    %v1880 = vpop.f32.mrb[0].mxu0
    %v1881 = vadd.f32 0.0, %v1880
    %1882 = vmatprep.mubr.f32.mxu0 0.0
    %1883 = vmatmul.mubr.f32.gmra.mrb[0].mxu0 %v1625
    %v1884 = vpop.f32.mrb[0].mxu0
    %v1885 = vadd.f32 0.0, %v1884
    %v1886 = vpop.f32.mrb[0].mxu0
    %v1887 = vadd.f32 0.0, %v1886
    %1888 = vmatprep.mubr.f32.mxu0 0.0
    %1889 = vmatmul.mubr.f32.gmra.mrb[0].mxu0 %v1774
    %v1890 = vpop.f32.mrb[0].mxu0
    %v1891 = vadd.f32 0.0, %v1890
    %v1892 = vpop.f32.mrb[0].mxu0
    %v1893 = vadd.f32 0.0, %v1892
    %1894 = vdwg.mxu0
    %v1895 = vadd.f32 %v1746, %v1849
    %v1896 = vadd.f32 %v1747, %v1851
    %v1897 = vadd.f32 %v1748, %v1855
    %v1898 = vadd.f32 %v1749, %v1857
    %v1899 = vadd.f32 %v1750, %v1861
    %v1900 = vadd.f32 %v1751, %v1863
    %v1901 = vadd.f32 %v1752, %v1867
    %v1902 = vadd.f32 %v1753, %v1869
    %v1903 = vadd.f32 %v1754, %v1873
    %v1904 = vadd.f32 %v1755, %v1875
    %v1905 = vadd.f32 %v1756, %v1879
    %v1906 = vadd.f32 %v1757, %v1881
    %v1907 = vadd.f32 %v1758, %v1885
    %v1908 = vadd.f32 %v1759, %v1887
    %v1909 = vadd.f32 %v1760, %v1891
    %v1910 = vadd.f32 %v1761, %v1893
    %s1911 = scalar_lea.vmem %s3, 320
    %v1912 = vld [vmem:[%s1911] sm:$0xff]
    %v1913 = vld [vmem:[%s1911 + $0x8] sm:$0xff]
    %v1914 = vld [vmem:[%s1911 + $0x10] sm:$0xff]
    %v1915 = vld [vmem:[%s1911 + $0x18] sm:$0xff]
    %v1916 = vld [vmem:[%s1911 + $0x20] sm:$0xff]
    %v1917 = vld [vmem:[%s1911 + $0x28] sm:$0xff]
    %v1918 = vld [vmem:[%s1911 + $0x30] sm:$0xff]
    %v1919 = vld [vmem:[%s1911 + $0x38] sm:$0xff]
    %v1920 = vld [vmem:[%s1911 + $0x40] sm:$0xf]
    %v1921 = vld [vmem:[%s1911 + $0x48] sm:$0xf]
    %v1923 = vsel %vm1347, %v1325, 0
    %v1926 = vsel %vm171, %v1920, 0
    %v1929 = vsel %vm171, %v1921, 0
    %1931 = vmatprep.subr.mxu0 %v1913
    %1932 = vmatpush1.msra.mxu0 %v1912
    %1933 = vmatprep.subr.mxu0 %v1915
    %1934 = vmatpush1.msra.mxu0 %v1914
    %1935 = vmatprep.subr.mxu0 %v1917
    %1936 = vmatpush1.msra.mxu0 %v1916
    %1937 = vmatprep.subr.mxu0 %v1919
    %1938 = vmatpush1.msra.mxu0 %v1918
    %1939 = vmatprep.subr.mxu0 %v1929
    %1940 = vmatpush1.msra.mxu0 %v1926
    %1941 = vmatprep.subr.mxu0 0.0
    %1942 = vmatpush1.msra.mxu0 0.0
    %1943 = vmatprep.subr.mxu0 0.0
    %1944 = vmatpush1.msra.mxu0 0.0
    %1945 = vmatprep.subr.mxu0 0.0
    %1946 = vmatpush1.msra.mxu0 0.0
    %1947 = vmatprep.subr.mxu0 0.0
    %1948 = vmatpush1.msra.mxu0 0.0
    %1949 = vmatprep.subr.mxu0 0.0
    %1950 = vmatpush1.msra.mxu0 0.0
    %1951 = vmatprep.subr.mxu0 0.0
    %1952 = vmatpush1.msra.mxu0 0.0
    %1953 = vmatprep.subr.mxu0 0.0
    %1954 = vmatpush1.msra.mxu0 0.0
    %1955 = vmatprep.subr.mxu0 0.0
    %1956 = vmatpush1.msra.mxu0 0.0
    %1957 = vmatprep.subr.mxu0 0.0
    %1958 = vmatpush1.msra.mxu0 0.0
    %1959 = vmatprep.subr.mxu0 0.0
    %1960 = vmatpush1.msra.mxu0 0.0
    %1961 = vmatprep.subr.mxu0 0.0
    %1962 = vmatpush1.msra.mxu0 0.0
    %1963 = vmatprep.subr.mxu0 0.0
    %1964 = vmatpush1.msra.mxu0 0.0
    %1965 = vmatprep.subr.mxu0 0.0
    %1966 = vmatpush1.msra.mxu0 0.0
    %1967 = vmatprep.subr.mxu0 0.0
    %1968 = vmatpush1.msra.mxu0 0.0
    %1969 = vmatprep.subr.mxu0 0.0
    %1970 = vmatpush1.msra.mxu0 0.0
    %1971 = vmatprep.subr.mxu0 0.0
    %1972 = vmatpush1.msra.mxu0 0.0
    %1973 = vmatprep.subr.mxu0 0.0
    %1974 = vmatpush1.msra.mxu0 0.0
    %1975 = vmatprep.subr.mxu0 0.0
    %1976 = vmatpush1.msra.mxu0 0.0
    %1977 = vmatprep.subr.mxu0 0.0
    %1978 = vmatpush1.msra.mxu0 0.0
    %1979 = vmatprep.subr.mxu0 0.0
    %1980 = vmatpush1.msra.mxu0 0.0
    %1981 = vmatprep.subr.mxu0 0.0
    %1982 = vmatpush1.msra.mxu0 0.0
    %1983 = vmatprep.subr.mxu0 0.0
    %1984 = vmatpush1.msra.mxu0 0.0
    %1985 = vmatprep.subr.mxu0 0.0
    %1986 = vmatpush1.msra.mxu0 0.0
    %1987 = vmatprep.subr.mxu0 0.0
    %1988 = vmatpush1.msra.mxu0 0.0
    %1989 = vmatprep.subr.mxu0 0.0
    %1990 = vmatpush1.msra.mxu0 0.0
    %1991 = vmatprep.subr.mxu0 0.0
    %1992 = vmatpush1.msra.mxu0 0.0
    %1993 = vmatprep.subr.mxu0 0.0
    %1994 = vmatpush1.msra.mxu0 0.0
    %1995 = vmatprep.mubr.f32.mxu0 0.0
    %1996 = vmatmul.mubr.f32.gmra.mrb[0].mxu0 %v1358
    %v1997 = vpop.f32.mrb[0].mxu0
    %v1998 = vadd.f32 0.0, %v1997
    %v1999 = vpop.f32.mrb[0].mxu0
    %v2000 = vadd.f32 0.0, %v1999
    %2001 = vmatprep.mubr.f32.mxu0 0.0
    %2002 = vmatmul.mubr.f32.gmra.mrb[0].mxu0 %v1361
    %v2003 = vpop.f32.mrb[0].mxu0
    %v2004 = vadd.f32 0.0, %v2003
    %v2005 = vpop.f32.mrb[0].mxu0
    %v2006 = vadd.f32 0.0, %v2005
    %2007 = vmatprep.mubr.f32.mxu0 0.0
    %2008 = vmatmul.mubr.f32.gmra.mrb[0].mxu0 %v1364
    %v2009 = vpop.f32.mrb[0].mxu0
    %v2010 = vadd.f32 0.0, %v2009
    %v2011 = vpop.f32.mrb[0].mxu0
    %v2012 = vadd.f32 0.0, %v2011
    %2013 = vmatprep.mubr.f32.mxu0 0.0
    %2014 = vmatmul.mubr.f32.gmra.mrb[0].mxu0 %v1367
    %v2015 = vpop.f32.mrb[0].mxu0
    %v2016 = vadd.f32 0.0, %v2015
    %v2017 = vpop.f32.mrb[0].mxu0
    %v2018 = vadd.f32 0.0, %v2017
    %2019 = vmatprep.mubr.f32.mxu0 0.0
    %2020 = vmatmul.mubr.f32.gmra.mrb[0].mxu0 %v1370
    %v2021 = vpop.f32.mrb[0].mxu0
    %v2022 = vadd.f32 0.0, %v2021
    %v2023 = vpop.f32.mrb[0].mxu0
    %v2024 = vadd.f32 0.0, %v2023
    %2025 = vmatprep.mubr.f32.mxu0 0.0
    %2026 = vmatmul.mubr.f32.gmra.mrb[0].mxu0 %v1625
    %v2027 = vpop.f32.mrb[0].mxu0
    %v2028 = vadd.f32 0.0, %v2027
    %v2029 = vpop.f32.mrb[0].mxu0
    %v2030 = vadd.f32 0.0, %v2029
    %2031 = vmatprep.mubr.f32.mxu0 0.0
    %2032 = vmatmul.mubr.f32.gmra.mrb[0].mxu0 %v1774
    %v2033 = vpop.f32.mrb[0].mxu0
    %v2034 = vadd.f32 0.0, %v2033
    %v2035 = vpop.f32.mrb[0].mxu0
    %v2036 = vadd.f32 0.0, %v2035
    %2037 = vmatprep.mubr.f32.mxu0 0.0
    %2038 = vmatmul.mubr.f32.gmra.mrb[0].mxu0 %v1923
    %v2039 = vpop.f32.mrb[0].mxu0
    %v2040 = vadd.f32 0.0, %v2039
    %v2041 = vpop.f32.mrb[0].mxu0
    %v2042 = vadd.f32 0.0, %v2041
    %2043 = vdwg.mxu0
    %v2044 = vadd.f32 %v1895, %v1998
    %v2045 = vadd.f32 %v1896, %v2000
    %v2046 = vadd.f32 %v1897, %v2004
    %v2047 = vadd.f32 %v1898, %v2006
    %v2048 = vadd.f32 %v1899, %v2010
    %v2049 = vadd.f32 %v1900, %v2012
    %v2050 = vadd.f32 %v1901, %v2016
    %v2051 = vadd.f32 %v1902, %v2018
    %v2052 = vadd.f32 %v1903, %v2022
    %v2053 = vadd.f32 %v1904, %v2024
    %v2054 = vadd.f32 %v1905, %v2028
    %v2055 = vadd.f32 %v1906, %v2030
    %v2056 = vadd.f32 %v1907, %v2034
    %v2057 = vadd.f32 %v1908, %v2036
    %v2058 = vadd.f32 %v1909, %v2040
    %v2059 = vadd.f32 %v1910, %v2042
    %v2060 = vld [vmem:[%s4] sm:$0x3]
    %v2062 = vlaneseq
    %v2063 = vshrl.u32 %v2062, 7
    %v2064 = vsub.s32 0, %v2063
    %v2065 = vrot.slane %v2060, %v2064
    %v2066 = vlaneseq
    %v2067 = vshrl.u32 %v2066, 7
    %v2068 = vsub.s32 1, %v2067
    %v2069 = vrot.slane %v2060, %v2068
    %v2072 = vadd.f32 %v2044, %v2065
    %v2073 = vadd.f32 %v2045, %v2069
    %v2074 = vadd.f32 %v2046, %v2065
    %v2075 = vadd.f32 %v2047, %v2069
    %v2076 = vadd.f32 %v2048, %v2065
    %v2077 = vadd.f32 %v2049, %v2069
    %v2078 = vadd.f32 %v2050, %v2065
    %v2079 = vadd.f32 %v2051, %v2069
    %v2080 = vadd.f32 %v2052, %v2065
    %v2081 = vadd.f32 %v2053, %v2069
    %v2082 = vadd.f32 %v2054, %v2065
    %v2083 = vadd.f32 %v2055, %v2069
    %v2084 = vadd.f32 %v2056, %v2065
    %v2085 = vadd.f32 %v2057, %v2069
    %v2086 = vadd.f32 %v2058, %v2065
    %v2087 = vadd.f32 %v2059, %v2069
    %v2088 = vmax.f32 %v2072, %v2074
    %v2089 = vmax.f32 %v2073, %v2075
    %v2090 = vmax.f32 %v2076, %v2078
    %v2091 = vmax.f32 %v2077, %v2079
    %v2092 = vmax.f32 %v2080, %v2082
    %v2093 = vmax.f32 %v2081, %v2083
    %v2094 = vmax.f32 %v2084, %v2086
    %v2095 = vmax.f32 %v2085, %v2087
    %v2096 = vmax.f32 %v2088, %v2089
    %v2097 = vmax.f32 %v2090, %v2091
    %v2098 = vmax.f32 %v2092, %v2093
    %v2099 = vmax.f32 %v2094, %v2095
    %v2100 = vmax.f32 %v2096, 0.0
    %v2101 = vmax.f32 %v2097, 0.0
    %v2102 = vmax.f32 %v2098, 0.0
    %v2103 = vmax.f32 %v2099, 0.0
    %v2104 = vld [vmem:[%s5] sm:$0xff]
    %v2105 = vld [vmem:[%s5 + $0x8] sm:$0xff]
    %v2106 = vld [vmem:[%s5 + $0x10] sm:$0xff]
    %v2107 = vld [vmem:[%s5 + $0x18] sm:$0xff]
    %v2108 = vld [vmem:[%s5 + $0x20] sm:$0xff]
    %v2109 = vld [vmem:[%s5 + $0x28] sm:$0xff]
    %v2110 = vld [vmem:[%s5 + $0x30] sm:$0xff]
    %v2111 = vld [vmem:[%s5 + $0x38] sm:$0xff]
    %v2112 = vld [vmem:[%s5 + $0x40] sm:$0xff]
    %v2113 = vld [vmem:[%s5 + $0x48] sm:$0xff]
    %s2114 = scalar_lea.vmem %s5, 80
    %v2115 = vld [vmem:[%s2114] sm:$0xff]
    %v2116 = vld [vmem:[%s2114 + $0x8] sm:$0xff]
    %v2117 = vld [vmem:[%s2114 + $0x10] sm:$0xff]
    %v2118 = vld [vmem:[%s2114 + $0x18] sm:$0xff]
    %v2119 = vld [vmem:[%s2114 + $0x20] sm:$0xff]
    %v2120 = vld [vmem:[%s2114 + $0x28] sm:$0xff]
    %v2121 = vld [vmem:[%s2114 + $0x30] sm:$0xff]
    %v2122 = vld [vmem:[%s2114 + $0x38] sm:$0xff]
    %v2123 = vld [vmem:[%s2114 + $0x40] sm:$0xff]
    %v2124 = vld [vmem:[%s2114 + $0x48] sm:$0xff]
    %vm2125 = vcmask 654336
    %v2127 = vsel %vm2125, %v2101, 0
    %2129 = vmatprep.subr.mxu0 0.0
    %2130 = vmatpush1.msra.mxu0 %v2115
    %2131 = vmatprep.subr.mxu0 0.0
    %2132 = vmatpush1.msra.mxu0 %v2116
    %2133 = vmatprep.subr.mxu0 0.0
    %2134 = vmatpush1.msra.mxu0 %v2117
    %2135 = vmatprep.subr.mxu0 0.0
    %2136 = vmatpush1.msra.mxu0 %v2118
    %2137 = vmatprep.subr.mxu0 0.0
    %2138 = vmatpush1.msra.mxu0 %v2119
    %2139 = vmatprep.subr.mxu0 0.0
    %2140 = vmatpush1.msra.mxu0 %v2120
    %2141 = vmatprep.subr.mxu0 0.0
    %2142 = vmatpush1.msra.mxu0 %v2121
    %2143 = vmatprep.subr.mxu0 0.0
    %2144 = vmatpush1.msra.mxu0 %v2122
    %2145 = vmatprep.subr.mxu0 0.0
    %2146 = vmatpush1.msra.mxu0 %v2123
    %2147 = vmatprep.subr.mxu0 0.0
    %2148 = vmatpush1.msra.mxu0 %v2124
    %2149 = vmatprep.subr.mxu0 0.0
    %2150 = vmatpush1.msra.mxu0 0.0
    %2151 = vmatprep.subr.mxu0 0.0
    %2152 = vmatpush1.msra.mxu0 0.0
    %2153 = vmatprep.subr.mxu0 0.0
    %2154 = vmatpush1.msra.mxu0 0.0
    %2155 = vmatprep.subr.mxu0 0.0
    %2156 = vmatpush1.msra.mxu0 0.0
    %2157 = vmatprep.subr.mxu0 0.0
    %2158 = vmatpush1.msra.mxu0 0.0
    %2159 = vmatprep.subr.mxu0 0.0
    %2160 = vmatpush1.msra.mxu0 0.0
    %2161 = vmatprep.subr.mxu0 0.0
    %2162 = vmatpush1.msra.mxu0 0.0
    %2163 = vmatprep.subr.mxu0 0.0
    %2164 = vmatpush1.msra.mxu0 0.0
    %2165 = vmatprep.subr.mxu0 0.0
    %2166 = vmatpush1.msra.mxu0 0.0
    %2167 = vmatprep.subr.mxu0 0.0
    %2168 = vmatpush1.msra.mxu0 0.0
    %2169 = vmatprep.subr.mxu0 0.0
    %2170 = vmatpush1.msra.mxu0 0.0
    %2171 = vmatprep.subr.mxu0 0.0
    %2172 = vmatpush1.msra.mxu0 0.0
    %2173 = vmatprep.subr.mxu0 0.0
    %2174 = vmatpush1.msra.mxu0 0.0
    %2175 = vmatprep.subr.mxu0 0.0
    %2176 = vmatpush1.msra.mxu0 0.0
    %2177 = vmatprep.subr.mxu0 0.0
    %2178 = vmatpush1.msra.mxu0 0.0
    %2179 = vmatprep.subr.mxu0 0.0
    %2180 = vmatpush1.msra.mxu0 0.0
    %2181 = vmatprep.subr.mxu0 0.0
    %2182 = vmatpush1.msra.mxu0 0.0
    %2183 = vmatprep.subr.mxu0 0.0
    %2184 = vmatpush1.msra.mxu0 0.0
    %2185 = vmatprep.subr.mxu0 0.0
    %2186 = vmatpush1.msra.mxu0 0.0
    %2187 = vmatprep.subr.mxu0 0.0
    %2188 = vmatpush1.msra.mxu0 0.0
    %2189 = vmatprep.subr.mxu0 0.0
    %2190 = vmatpush1.msra.mxu0 0.0
    %2191 = vmatprep.subr.mxu0 0.0
    %2192 = vmatpush1.msra.mxu0 0.0
    %2193 = vmatprep.mubr.f32.mxu0 0.0
    %2194 = vmatmul.mubr.f32.gmra.mrb[0].mxu0 %v2127
    %v2195 = vpop.f32.mrb[0].mxu0
    %v2196 = vadd.f32 0.0, %v2195
    %v2197 = vpop.f32.mrb[0].mxu0
    %2198 = vdwg.mxu0
    %v2200 = vsel %vm2125, %v2100, 0
    %2202 = vmatprep.subr.mxu0 0.0
    %2203 = vmatpush1.msra.mxu0 %v2104
    %2204 = vmatprep.subr.mxu0 0.0
    %2205 = vmatpush1.msra.mxu0 %v2105
    %2206 = vmatprep.subr.mxu0 0.0
    %2207 = vmatpush1.msra.mxu0 %v2106
    %2208 = vmatprep.subr.mxu0 0.0
    %2209 = vmatpush1.msra.mxu0 %v2107
    %2210 = vmatprep.subr.mxu0 0.0
    %2211 = vmatpush1.msra.mxu0 %v2108
    %2212 = vmatprep.subr.mxu0 0.0
    %2213 = vmatpush1.msra.mxu0 %v2109
    %2214 = vmatprep.subr.mxu0 0.0
    %2215 = vmatpush1.msra.mxu0 %v2110
    %2216 = vmatprep.subr.mxu0 0.0
    %2217 = vmatpush1.msra.mxu0 %v2111
    %2218 = vmatprep.subr.mxu0 0.0
    %2219 = vmatpush1.msra.mxu0 %v2112
    %2220 = vmatprep.subr.mxu0 0.0
    %2221 = vmatpush1.msra.mxu0 %v2113
    %2222 = vmatprep.subr.mxu0 0.0
    %2223 = vmatpush1.msra.mxu0 0.0
    %2224 = vmatprep.subr.mxu0 0.0
    %2225 = vmatpush1.msra.mxu0 0.0
    %2226 = vmatprep.subr.mxu0 0.0
    %2227 = vmatpush1.msra.mxu0 0.0
    %2228 = vmatprep.subr.mxu0 0.0
    %2229 = vmatpush1.msra.mxu0 0.0
    %2230 = vmatprep.subr.mxu0 0.0
    %2231 = vmatpush1.msra.mxu0 0.0
    %2232 = vmatprep.subr.mxu0 0.0
    %2233 = vmatpush1.msra.mxu0 0.0
    %2234 = vmatprep.subr.mxu0 0.0
    %2235 = vmatpush1.msra.mxu0 0.0
    %2236 = vmatprep.subr.mxu0 0.0
    %2237 = vmatpush1.msra.mxu0 0.0
    %2238 = vmatprep.subr.mxu0 0.0
    %2239 = vmatpush1.msra.mxu0 0.0
    %2240 = vmatprep.subr.mxu0 0.0
    %2241 = vmatpush1.msra.mxu0 0.0
    %2242 = vmatprep.subr.mxu0 0.0
    %2243 = vmatpush1.msra.mxu0 0.0
    %2244 = vmatprep.subr.mxu0 0.0
    %2245 = vmatpush1.msra.mxu0 0.0
    %2246 = vmatprep.subr.mxu0 0.0
    %2247 = vmatpush1.msra.mxu0 0.0
    %2248 = vmatprep.subr.mxu0 0.0
    %2249 = vmatpush1.msra.mxu0 0.0
    %2250 = vmatprep.subr.mxu0 0.0
    %2251 = vmatpush1.msra.mxu0 0.0
    %2252 = vmatprep.subr.mxu0 0.0
    %2253 = vmatpush1.msra.mxu0 0.0
    %2254 = vmatprep.subr.mxu0 0.0
    %2255 = vmatpush1.msra.mxu0 0.0
    %2256 = vmatprep.subr.mxu0 0.0
    %2257 = vmatpush1.msra.mxu0 0.0
    %2258 = vmatprep.subr.mxu0 0.0
    %2259 = vmatpush1.msra.mxu0 0.0
    %2260 = vmatprep.subr.mxu0 0.0
    %2261 = vmatpush1.msra.mxu0 0.0
    %2262 = vmatprep.subr.mxu0 0.0
    %2263 = vmatpush1.msra.mxu0 0.0
    %2264 = vmatprep.subr.mxu0 0.0
    %2265 = vmatpush1.msra.mxu0 0.0
    %2266 = vmatprep.mubr.f32.mxu0 0.0
    %2267 = vmatmul.mubr.f32.gmra.mrb[0].mxu0 %v2200
    %v2268 = vpop.f32.mrb[0].mxu0
    %v2269 = vadd.f32 %v2196, %v2268
    %v2270 = vpop.f32.mrb[0].mxu0
    %2271 = vdwg.mxu0
    %s2272 = scalar_lea.vmem %s5, 160
    %v2273 = vld [vmem:[%s2272] sm:$0xff]
    %v2274 = vld [vmem:[%s2272 + $0x8] sm:$0xff]
    %v2275 = vld [vmem:[%s2272 + $0x10] sm:$0xff]
    %v2276 = vld [vmem:[%s2272 + $0x18] sm:$0xff]
    %v2277 = vld [vmem:[%s2272 + $0x20] sm:$0xff]
    %v2278 = vld [vmem:[%s2272 + $0x28] sm:$0xff]
    %v2279 = vld [vmem:[%s2272 + $0x30] sm:$0xff]
    %v2280 = vld [vmem:[%s2272 + $0x38] sm:$0xff]
    %v2281 = vld [vmem:[%s2272 + $0x40] sm:$0xff]
    %v2282 = vld [vmem:[%s2272 + $0x48] sm:$0xff]
    %v2284 = vsel %vm2125, %v2102, 0
    %2286 = vmatprep.subr.mxu0 0.0
    %2287 = vmatpush1.msra.mxu0 %v2273
    %2288 = vmatprep.subr.mxu0 0.0
    %2289 = vmatpush1.msra.mxu0 %v2274
    %2290 = vmatprep.subr.mxu0 0.0
    %2291 = vmatpush1.msra.mxu0 %v2275
    %2292 = vmatprep.subr.mxu0 0.0
    %2293 = vmatpush1.msra.mxu0 %v2276
    %2294 = vmatprep.subr.mxu0 0.0
    %2295 = vmatpush1.msra.mxu0 %v2277
    %2296 = vmatprep.subr.mxu0 0.0
    %2297 = vmatpush1.msra.mxu0 %v2278
    %2298 = vmatprep.subr.mxu0 0.0
    %2299 = vmatpush1.msra.mxu0 %v2279
    %2300 = vmatprep.subr.mxu0 0.0
    %2301 = vmatpush1.msra.mxu0 %v2280
    %2302 = vmatprep.subr.mxu0 0.0
    %2303 = vmatpush1.msra.mxu0 %v2281
    %2304 = vmatprep.subr.mxu0 0.0
    %2305 = vmatpush1.msra.mxu0 %v2282
    %2306 = vmatprep.subr.mxu0 0.0
    %2307 = vmatpush1.msra.mxu0 0.0
    %2308 = vmatprep.subr.mxu0 0.0
    %2309 = vmatpush1.msra.mxu0 0.0
    %2310 = vmatprep.subr.mxu0 0.0
    %2311 = vmatpush1.msra.mxu0 0.0
    %2312 = vmatprep.subr.mxu0 0.0
    %2313 = vmatpush1.msra.mxu0 0.0
    %2314 = vmatprep.subr.mxu0 0.0
    %2315 = vmatpush1.msra.mxu0 0.0
    %2316 = vmatprep.subr.mxu0 0.0
    %2317 = vmatpush1.msra.mxu0 0.0
    %2318 = vmatprep.subr.mxu0 0.0
    %2319 = vmatpush1.msra.mxu0 0.0
    %2320 = vmatprep.subr.mxu0 0.0
    %2321 = vmatpush1.msra.mxu0 0.0
    %2322 = vmatprep.subr.mxu0 0.0
    %2323 = vmatpush1.msra.mxu0 0.0
    %2324 = vmatprep.subr.mxu0 0.0
    %2325 = vmatpush1.msra.mxu0 0.0
    %2326 = vmatprep.subr.mxu0 0.0
    %2327 = vmatpush1.msra.mxu0 0.0
    %2328 = vmatprep.subr.mxu0 0.0
    %2329 = vmatpush1.msra.mxu0 0.0
    %2330 = vmatprep.subr.mxu0 0.0
    %2331 = vmatpush1.msra.mxu0 0.0
    %2332 = vmatprep.subr.mxu0 0.0
    %2333 = vmatpush1.msra.mxu0 0.0
    %2334 = vmatprep.subr.mxu0 0.0
    %2335 = vmatpush1.msra.mxu0 0.0
    %2336 = vmatprep.subr.mxu0 0.0
    %2337 = vmatpush1.msra.mxu0 0.0
    %2338 = vmatprep.subr.mxu0 0.0
    %2339 = vmatpush1.msra.mxu0 0.0
    %2340 = vmatprep.subr.mxu0 0.0
    %2341 = vmatpush1.msra.mxu0 0.0
    %2342 = vmatprep.subr.mxu0 0.0
    %2343 = vmatpush1.msra.mxu0 0.0
    %2344 = vmatprep.subr.mxu0 0.0
    %2345 = vmatpush1.msra.mxu0 0.0
    %2346 = vmatprep.subr.mxu0 0.0
    %2347 = vmatpush1.msra.mxu0 0.0
    %2348 = vmatprep.subr.mxu0 0.0
    %2349 = vmatpush1.msra.mxu0 0.0
    %2350 = vmatprep.mubr.f32.mxu0 0.0
    %2351 = vmatmul.mubr.f32.gmra.mrb[0].mxu0 %v2284
    %v2352 = vpop.f32.mrb[0].mxu0
    %v2353 = vadd.f32 0.0, %v2352
    %v2354 = vpop.f32.mrb[0].mxu0
    %2355 = vdwg.mxu0
    %v2356 = vadd.f32 %v2269, %v2353
    %s2357 = scalar_lea.vmem %s5, 240
    %v2358 = vld [vmem:[%s2357] sm:$0xff]
    %v2359 = vld [vmem:[%s2357 + $0x8] sm:$0xff]
    %v2360 = vld [vmem:[%s2357 + $0x10] sm:$0xff]
    %v2361 = vld [vmem:[%s2357 + $0x18] sm:$0xff]
    %v2362 = vld [vmem:[%s2357 + $0x20] sm:$0xff]
    %v2363 = vld [vmem:[%s2357 + $0x28] sm:$0xff]
    %v2364 = vld [vmem:[%s2357 + $0x30] sm:$0xff]
    %v2365 = vld [vmem:[%s2357 + $0x38] sm:$0xff]
    %v2366 = vld [vmem:[%s2357 + $0x40] sm:$0xff]
    %v2367 = vld [vmem:[%s2357 + $0x48] sm:$0xff]
    %v2369 = vsel %vm2125, %v2103, 0
    %2371 = vmatprep.subr.mxu0 0.0
    %2372 = vmatpush1.msra.mxu0 %v2358
    %2373 = vmatprep.subr.mxu0 0.0
    %2374 = vmatpush1.msra.mxu0 %v2359
    %2375 = vmatprep.subr.mxu0 0.0
    %2376 = vmatpush1.msra.mxu0 %v2360
    %2377 = vmatprep.subr.mxu0 0.0
    %2378 = vmatpush1.msra.mxu0 %v2361
    %2379 = vmatprep.subr.mxu0 0.0
    %2380 = vmatpush1.msra.mxu0 %v2362
    %2381 = vmatprep.subr.mxu0 0.0
    %2382 = vmatpush1.msra.mxu0 %v2363
    %2383 = vmatprep.subr.mxu0 0.0
    %2384 = vmatpush1.msra.mxu0 %v2364
    %2385 = vmatprep.subr.mxu0 0.0
    %2386 = vmatpush1.msra.mxu0 %v2365
    %2387 = vmatprep.subr.mxu0 0.0
    %2388 = vmatpush1.msra.mxu0 %v2366
    %2389 = vmatprep.subr.mxu0 0.0
    %2390 = vmatpush1.msra.mxu0 %v2367
    %2391 = vmatprep.subr.mxu0 0.0
    %2392 = vmatpush1.msra.mxu0 0.0
    %2393 = vmatprep.subr.mxu0 0.0
    %2394 = vmatpush1.msra.mxu0 0.0
    %2395 = vmatprep.subr.mxu0 0.0
    %2396 = vmatpush1.msra.mxu0 0.0
    %2397 = vmatprep.subr.mxu0 0.0
    %2398 = vmatpush1.msra.mxu0 0.0
    %2399 = vmatprep.subr.mxu0 0.0
    %2400 = vmatpush1.msra.mxu0 0.0
    %2401 = vmatprep.subr.mxu0 0.0
    %2402 = vmatpush1.msra.mxu0 0.0
    %2403 = vmatprep.subr.mxu0 0.0
    %2404 = vmatpush1.msra.mxu0 0.0
    %2405 = vmatprep.subr.mxu0 0.0
    %2406 = vmatpush1.msra.mxu0 0.0
    %2407 = vmatprep.subr.mxu0 0.0
    %2408 = vmatpush1.msra.mxu0 0.0
    %2409 = vmatprep.subr.mxu0 0.0
    %2410 = vmatpush1.msra.mxu0 0.0
    %2411 = vmatprep.subr.mxu0 0.0
    %2412 = vmatpush1.msra.mxu0 0.0
    %2413 = vmatprep.subr.mxu0 0.0
    %2414 = vmatpush1.msra.mxu0 0.0
    %2415 = vmatprep.subr.mxu0 0.0
    %2416 = vmatpush1.msra.mxu0 0.0
    %2417 = vmatprep.subr.mxu0 0.0
    %2418 = vmatpush1.msra.mxu0 0.0
    %2419 = vmatprep.subr.mxu0 0.0
    %2420 = vmatpush1.msra.mxu0 0.0
    %2421 = vmatprep.subr.mxu0 0.0
    %2422 = vmatpush1.msra.mxu0 0.0
    %2423 = vmatprep.subr.mxu0 0.0
    %2424 = vmatpush1.msra.mxu0 0.0
    %2425 = vmatprep.subr.mxu0 0.0
    %2426 = vmatpush1.msra.mxu0 0.0
    %2427 = vmatprep.subr.mxu0 0.0
    %2428 = vmatpush1.msra.mxu0 0.0
    %2429 = vmatprep.subr.mxu0 0.0
    %2430 = vmatpush1.msra.mxu0 0.0
    %2431 = vmatprep.subr.mxu0 0.0
    %2432 = vmatpush1.msra.mxu0 0.0
    %2433 = vmatprep.subr.mxu0 0.0
    %2434 = vmatpush1.msra.mxu0 0.0
    %2435 = vmatprep.mubr.f32.mxu0 0.0
    %2436 = vmatmul.mubr.f32.gmra.mrb[0].mxu0 %v2369
    %v2437 = vpop.f32.mrb[0].mxu0
    %v2438 = vadd.f32 0.0, %v2437
    %v2439 = vpop.f32.mrb[0].mxu0
    %2440 = vdwg.mxu0
    %v2441 = vadd.f32 %v2356, %v2438
    %v2442 = vld [vmem:[%s6] sm:$0x1]
    %v2444 = vlaneseq
    %v2445 = vshrl.u32 %v2444, 7
    %v2446 = vsub.s32 0, %v2445
    %v2447 = vrot.slane %v2442, %v2446
    %v2449 = vadd.f32 %v2441, %v2447
    %v2450 = vmax.f32 %v2449, 0.0
    %v2451 = vld [vmem:[%s7] sm:$0xff]
    %v2452 = vld [vmem:[%s7 + $0x8] sm:$0xff]
    %v2453 = vld [vmem:[%s7 + $0x10] sm:$0xff]
    %v2454 = vld [vmem:[%s7 + $0x18] sm:$0xff]
    %v2455 = vld [vmem:[%s7 + $0x20] sm:$0xff]
    %v2456 = vld [vmem:[%s7 + $0x28] sm:$0xff]
    %v2457 = vld [vmem:[%s7 + $0x30] sm:$0x3]
    %v2458 = vld [vmem:[%s8] sm:$0x1]
    %v2460 = vlaneseq
    %v2461 = vshrl.u32 %v2460, 7
    %v2462 = vsub.s32 0, %v2461
    %v2463 = vrot.slane %v2458, %v2462
    %vm2465 = vcmask 408576
    %v2467 = vsel %vm2465, %v2450, 0
    %vm2469 = vcmask 1041408
    %v2471 = vsel %vm2469, %v2457, 0
    %2473 = vmatprep.subr.mxu0 0.0
    %2474 = vmatpush1.msra.mxu0 %v2451
    %2475 = vmatprep.subr.mxu0 0.0
    %2476 = vmatpush1.msra.mxu0 %v2452
    %2477 = vmatprep.subr.mxu0 0.0
    %2478 = vmatpush1.msra.mxu0 %v2453
    %2479 = vmatprep.subr.mxu0 0.0
    %2480 = vmatpush1.msra.mxu0 %v2454
    %2481 = vmatprep.subr.mxu0 0.0
    %2482 = vmatpush1.msra.mxu0 %v2455
    %2483 = vmatprep.subr.mxu0 0.0
    %2484 = vmatpush1.msra.mxu0 %v2456
    %2485 = vmatprep.subr.mxu0 0.0
    %2486 = vmatpush1.msra.mxu0 %v2471
    %2487 = vmatprep.subr.mxu0 0.0
    %2488 = vmatpush1.msra.mxu0 0.0
    %2489 = vmatprep.subr.mxu0 0.0
    %2490 = vmatpush1.msra.mxu0 0.0
    %2491 = vmatprep.subr.mxu0 0.0
    %2492 = vmatpush1.msra.mxu0 0.0
    %2493 = vmatprep.subr.mxu0 0.0
    %2494 = vmatpush1.msra.mxu0 0.0
    %2495 = vmatprep.subr.mxu0 0.0
    %2496 = vmatpush1.msra.mxu0 0.0
    %2497 = vmatprep.subr.mxu0 0.0
    %2498 = vmatpush1.msra.mxu0 0.0
    %2499 = vmatprep.subr.mxu0 0.0
    %2500 = vmatpush1.msra.mxu0 0.0
    %2501 = vmatprep.subr.mxu0 0.0
    %2502 = vmatpush1.msra.mxu0 0.0
    %2503 = vmatprep.subr.mxu0 0.0
    %2504 = vmatpush1.msra.mxu0 0.0
    %2505 = vmatprep.subr.mxu0 0.0
    %2506 = vmatpush1.msra.mxu0 0.0
    %2507 = vmatprep.subr.mxu0 0.0
    %2508 = vmatpush1.msra.mxu0 0.0
    %2509 = vmatprep.subr.mxu0 0.0
    %2510 = vmatpush1.msra.mxu0 0.0
    %2511 = vmatprep.subr.mxu0 0.0
    %2512 = vmatpush1.msra.mxu0 0.0
    %2513 = vmatprep.subr.mxu0 0.0
    %2514 = vmatpush1.msra.mxu0 0.0
    %2515 = vmatprep.subr.mxu0 0.0
    %2516 = vmatpush1.msra.mxu0 0.0
    %2517 = vmatprep.subr.mxu0 0.0
    %2518 = vmatpush1.msra.mxu0 0.0
    %2519 = vmatprep.subr.mxu0 0.0
    %2520 = vmatpush1.msra.mxu0 0.0
    %2521 = vmatprep.subr.mxu0 0.0
    %2522 = vmatpush1.msra.mxu0 0.0
    %2523 = vmatprep.subr.mxu0 0.0
    %2524 = vmatpush1.msra.mxu0 0.0
    %2525 = vmatprep.subr.mxu0 0.0
    %2526 = vmatpush1.msra.mxu0 0.0
    %2527 = vmatprep.subr.mxu0 0.0
    %2528 = vmatpush1.msra.mxu0 0.0
    %2529 = vmatprep.subr.mxu0 0.0
    %2530 = vmatpush1.msra.mxu0 0.0
    %2531 = vmatprep.subr.mxu0 0.0
    %2532 = vmatpush1.msra.mxu0 0.0
    %2533 = vmatprep.subr.mxu0 0.0
    %2534 = vmatpush1.msra.mxu0 0.0
    %2535 = vmatprep.subr.mxu0 0.0
    %2536 = vmatpush1.msra.mxu0 0.0
    %2537 = vmatprep.mubr.f32.mxu0 0.0
    %2538 = vmatmul.mubr.f32.gmra.mrb[0].mxu0 %v2467
    %v2539 = vpop.f32.mrb[0].mxu0
    %v2540 = vadd.f32 %v2463, %v2539
    %v2541 = vpop.f32.mrb[0].mxu0
    %2542 = vdwg.mxu0
    %2543 = vst [vmem:[#allocation7] sm:$0xff] %v2540
    // Predicated region
    $region46: #{tpu_custom_call.1} parent=1 // pred_check
      _
    $region47: #{tpu_custom_call.1} parent=1 // pred_check_branch
      %2545 = sbr.rel (0) target = $region49
    $region48: #{tpu_custom_call.1} parent=1 // pred_region
      %s2547 = ssub.s32 128, 128
      %2548 = vsyncadd [#allocation4], %s2547
      %s2550 = sshll.u32 [#allocation7], 4
      %s2551 = int_to_ptr.vmem [resolvable:$true] %s2550
      %2553 = dma.vmem_to_hbm [thread:$0]  %s2551, 128, %s9, [#allocation4]
    $region49: #{tpu_custom_call.1} parent=1 // pred_fallthru
      _
    // Predicated region
    $region50: #{tpu_custom_call.1} parent=1 // pred_check
      _
    $region51: #{tpu_custom_call.1} parent=1 // pred_check_branch
      %2555 = sbr.rel (0) target = $region53
    $region52: #{tpu_custom_call.1} parent=1 // pred_region
      %2556 = dma.done [#allocation4], 128
    $region53: #{tpu_custom_call.1} parent=1 // pred_fallthru
      _
    %2557 = vsyncpa [#allocation3], 1
    %2558 = vsyncpa [#allocation6], 1
    %2559 = vsyncpa [#allocation4], 1

</llo_original>
